<compile_context>
chip_gen: v5e
topology: v5e:2x2
jax: 0.10.0
libtpu: 0.0.40
codegen_flags: <defaults>
</compile_context>

<pallas_src>
import functools

import jax
import jax.numpy as jnp
from jax.experimental import pallas as pl
from jax.experimental.pallas import tpu as pltpu

LN_EPS = 1e-5  # torch.nn.LayerNorm default


# ---------------------------------------------------------------------------
# Kernel
# ---------------------------------------------------------------------------
def _glr_block_kernel(x_ref, lnw_ref, lnb_ref, wqkv_ref, bqkv_ref, wp_ref,
                      bp_ref, y_ref, h_s, q_s, k_s, v_s, attn_s, *,
                      num_heads, scale):
    bb, C, N = x_ref.shape          # batch_block, patch_num, d_model
    Dh = C // num_heads
    BN = bb * N

    lnw = lnw_ref[...]              # (C, 1) f32
    lnb = lnb_ref[...]              # (C, 1) f32

    # ---- LayerNorm over patch_num (axis=1) on the WHOLE batch block ---------
    x_blk = x_ref[...].astype(jnp.float32)                  # (bb, C, N)
    mean = jnp.mean(x_blk, axis=1, keepdims=True)            # (bb, 1, N)
    xc = x_blk - mean
    var = jnp.mean(xc * xc, axis=1, keepdims=True)           # biased variance
    h_blk = xc * jax.lax.rsqrt(var + LN_EPS) * lnw + lnb      # (bb, C, N) f32

    # Gather LN output into a channel-major (C, bb*N) bf16 slab (lane-aligned
    # per-batch column stores; this is the layout the long matmuls want).
    for bi in range(bb):                                      # tiny static loop
        h_s[:, bi * N:(bi + 1) * N] = h_blk[bi].astype(jnp.bfloat16)

    # ---- fused q/kv projection: ONE matmul with bb*N-wide free dim ----------
    qkv = jnp.dot(wqkv_ref[...], h_s[...],
                  preferred_element_type=jnp.float32) + bqkv_ref[...]  # (3C, BN) f32
    # Split rows into q/k/v head-major slabs; fold the attention scale into q.
    q_s[...] = (qkv[0:C] * scale).reshape(num_heads, Dh, BN).astype(jnp.bfloat16)
    k_s[...] = qkv[C:2 * C].reshape(num_heads, Dh, BN).astype(jnp.bfloat16)
    v_s[...] = qkv[2 * C:3 * C].reshape(num_heads, Dh, BN).astype(jnp.bfloat16)

    # ---- per-batch, head-batched attention (fori_loop bounds live ranges) ----
    def attn_body(bi, carry):
        off = pl.multiple_of(bi * N, N)                       # lane-aligned offset
        q_b = q_s[:, :, pl.ds(off, N)]                        # (H, Dh, N) bf16
        k_b = k_s[:, :, pl.ds(off, N)]                        # (H, Dh, N) bf16
        v_b = v_s[:, :, pl.ds(off, N)]                        # (H, Dh, N) bf16
        # att[h, i, j] = sum_d q[h, d, i] * k[h, d, j]   (scale already folded in q)
        att = jax.lax.dot_general(q_b, k_b, (((1,), (1,)), ((0,), (0,))),
                                  preferred_element_type=jnp.float32)   # (H, N, N)
        att = att - jnp.max(att, axis=-1, keepdims=True)
        p = jnp.exp(att)
        p = p * pl.reciprocal(jnp.sum(p, axis=-1, keepdims=True), approx=True)
        # out[h, d, i] = sum_j v[h, d, j] * p[h, i, j]
        o = jax.lax.dot_general(v_b, p.astype(jnp.bfloat16),
                                (((2,), (2,)), ((0,), (0,))),
                                preferred_element_type=jnp.float32)     # (H, Dh, N)
        attn_s[:, pl.ds(off, N)] = o.reshape(C, N).astype(jnp.bfloat16)
        return carry

    jax.lax.fori_loop(0, bb, attn_body, 0)

    # ---- batched output projection + residual --------------------------------
    o2 = jnp.dot(wp_ref[...], attn_s[...],
                 preferred_element_type=jnp.float32) + bp_ref[...]      # (C, BN) f32
    for bi in range(bb):
        y_ref[bi] = (x_ref[bi].astype(jnp.float32)
                     + o2[:, bi * N:(bi + 1) * N]).astype(y_ref.dtype)


# ---------------------------------------------------------------------------
# Wrapper
# ---------------------------------------------------------------------------
def glr_block(x, ln_w, ln_b, wq, bq, wkv, bkv, wp, bp, *,
              num_heads, batch_block=4):
    """Fused GLRBlock forward.

    x        : (B, patch_num, d_model)
    ln_w/b   : (patch_num,)      LayerNorm affine
    wq, bq   : (C, C), (C,)      q Linear
    wkv, bkv : (2C, C), (2C,)    kv Linear
    wp, bp   : (C, C), (C,)      proj Linear
    """
    B, C, N = x.shape
    assert C % num_heads == 0, "patch_num must be divisible by num_heads"
    assert B % batch_block == 0
    head_dim = C // num_heads
    scale = head_dim ** -0.5
    grid = (B // batch_block,)   # keep even so both v7x TensorCores get equal work

    # Host-side parameter packing: fuse q + kv, bf16 weights (MXU operands),
    # f32 biases / LN params as (rows, 1) columns for lane-broadcast in-kernel.
    wqkv = jnp.concatenate([wq, wkv], axis=0).astype(jnp.bfloat16)            # (3C, C)
    bqkv = jnp.concatenate([bq, bkv], axis=0).reshape(-1, 1).astype(jnp.float32)
    wp_b = wp.astype(jnp.bfloat16)
    bp_c = bp.reshape(-1, 1).astype(jnp.float32)
    lnw_c = ln_w.reshape(-1, 1).astype(jnp.float32)
    lnb_c = ln_b.reshape(-1, 1).astype(jnp.float32)

    kernel = functools.partial(_glr_block_kernel, num_heads=num_heads, scale=scale)

    BN = batch_block * N
    grid_spec = pltpu.PrefetchScalarGridSpec(
        num_scalar_prefetch=0,
        grid=grid,
        in_specs=[
            pl.BlockSpec((batch_block, C, N), lambda g: (g, 0, 0)),   # x
            pl.BlockSpec((C, 1), lambda g: (0, 0)),                   # ln_w
            pl.BlockSpec((C, 1), lambda g: (0, 0)),                   # ln_b
            pl.BlockSpec((3 * C, C), lambda g: (0, 0)),               # wqkv (bf16)
            pl.BlockSpec((3 * C, 1), lambda g: (0, 0)),               # bqkv
            pl.BlockSpec((C, C), lambda g: (0, 0)),                   # wp   (bf16)
            pl.BlockSpec((C, 1), lambda g: (0, 0)),                   # bp
        ],
        out_specs=pl.BlockSpec((batch_block, C, N), lambda g: (g, 0, 0)),
        scratch_shapes=[
            pltpu.VMEM((C, BN), jnp.bfloat16),                 # h_s  : LN output slab
            pltpu.VMEM((num_heads, head_dim, BN), jnp.bfloat16),  # q_s
            pltpu.VMEM((num_heads, head_dim, BN), jnp.bfloat16),  # k_s
            pltpu.VMEM((num_heads, head_dim, BN), jnp.bfloat16),  # v_s
            pltpu.VMEM((C, BN), jnp.bfloat16),                 # attn_s
        ],
    )
    return pl.pallas_call(
        kernel,
        out_shape=jax.ShapeDtypeStruct((B, C, N), x.dtype),
        grid_spec=grid_spec,
        compiler_params=pltpu.CompilerParams(
            dimension_semantics=("parallel",),
        ),
    )(x, lnw_c, lnb_c, wqkv, bqkv, wp_b, bp_c)


# ---------------------------------------------------------------------------
# Pure-JAX reference (mirrors the torch forward) for correctness checking.
# ---------------------------------------------------------------------------
def _ref_glr_block(x, ln_w, ln_b, wq, bq, wkv, bkv, wp, bp, *, num_heads):
    B, C, N = x.shape
    hp = jax.lax.Precision.HIGHEST
    xt = jnp.transpose(x, (0, 2, 1))                      # (B, N, C)
    mean = jnp.mean(xt, axis=-1, keepdims=True)
    var = jnp.var(xt, axis=-1, keepdims=True)
    h = (xt - mean) / jnp.sqrt(var + LN_EPS) * ln_w + ln_b
    q = jnp.einsum('bnc,dc->bnd', h, wq, precision=hp) + bq      # (B, N, C)
    kv = jnp.einsum('bnc,dc->bnd', h, wkv, precision=hp) + bkv   # (B, N, 2C)
    k, v = kv[..., :C], kv[..., C:]
    Dh = C // num_heads

    def split_heads(t):                                   # (B, N, C) -> (B, H, N, Dh)
        return t.reshape(B, N, num_heads, Dh).transpose(0, 2, 1, 3)

    qh, kh, vh = split_heads(q), split_heads(k), split_heads(v)
    att = jnp.einsum('bhnd,bhmd->bhnm', qh, kh, precision=hp) * (Dh ** -0.5)
    att = jax.nn.softmax(att, axis=-1)
    o = jnp.einsum('bhnm,bhmd->bhnd', att, vh, precision=hp)     # (B, H, N, Dh)
    o = o.transpose(0, 2, 1, 3).reshape(B, N, C)
    o = jnp.einsum('bnc,dc->bnd', o, wp, precision=hp) + bp      # (B, N, C)
    return x + jnp.transpose(o, (0, 2, 1))                       # (B, C, N)


if __name__ == "__main__":
    # TPU-friendly small shapes: d_model = 128 keeps loads/stores lane-dense,
    # head_dim = 8 keeps head slabs sublane-aligned, grid = 2 (even).
    B, C, N = 8, 32, 128          # batch, patch_num, d_model
    num_heads = 4                 # head_dim = 8

    key = jax.random.PRNGKey(0)
    keys = jax.random.split(key, 9)
    x = jax.random.normal(keys[0], (B, C, N), dtype=jnp.float32)
    # trunc_normal(std=0.02)-style weights; LayerNorm ~ (1, 0), slightly perturbed
    # so every affine path is exercised.
    ln_w = jnp.ones((C,), jnp.float32) + 0.05 * jax.random.normal(keys[1], (C,))
    ln_b = 0.05 * jax.random.normal(keys[2], (C,))
    wq = 0.02 * jax.random.normal(keys[3], (C, C), dtype=jnp.float32)
    bq = 0.02 * jax.random.normal(keys[4], (C,), dtype=jnp.float32)
    wkv = 0.02 * jax.random.normal(keys[5], (2 * C, C), dtype=jnp.float32)
    bkv = 0.02 * jax.random.normal(keys[6], (2 * C,), dtype=jnp.float32)
    wp = 0.02 * jax.random.normal(keys[7], (C, C), dtype=jnp.float32)
    bp = 0.02 * jax.random.normal(keys[8], (C,), dtype=jnp.float32)

    y = glr_block(x, ln_w, ln_b, wq, bq, wkv, bkv, wp, bp,
                  num_heads=num_heads, batch_block=4)   # grid = (2,)
    y = jax.block_until_ready(y)

    y_ref = _ref_glr_block(x, ln_w, ln_b, wq, bq, wkv, bkv, wp, bp,
                           num_heads=num_heads)
    assert y.shape == (B, C, N)
    max_err = float(jnp.max(jnp.abs(y - y_ref)))
    # bf16 MXU operands + approx reciprocal => loosened tolerance (review note).
    assert jnp.allclose(y, y_ref, atol=2e-2, rtol=2e-2), f"max abs err {max_err}"

    print("KERNEL_OK")
</pallas_src>

<mosaic_0001>
module attributes {stable_mosaic.version = 11 : i64} {
  func.func @_glr_block_kernel(%arg0: i32, %arg1: memref<4x32x128xf32, #tpu.memory_space<vmem>>, %arg2: memref<32x1xf32, #tpu.memory_space<vmem>>, %arg3: memref<32x1xf32, #tpu.memory_space<vmem>>, %arg4: memref<96x32xbf16, #tpu.memory_space<vmem>>, %arg5: memref<96x1xf32, #tpu.memory_space<vmem>>, %arg6: memref<32x32xbf16, #tpu.memory_space<vmem>>, %arg7: memref<32x1xf32, #tpu.memory_space<vmem>>, %arg8: memref<4x32x128xf32, #tpu.memory_space<vmem>>, %arg9: memref<32x512xbf16, #tpu.memory_space<vmem>>, %arg10: memref<4x8x512xbf16, #tpu.memory_space<vmem>>, %arg11: memref<4x8x512xbf16, #tpu.memory_space<vmem>>, %arg12: memref<4x8x512xbf16, #tpu.memory_space<vmem>>, %arg13: memref<32x512xbf16, #tpu.memory_space<vmem>>) attributes {dimension_semantics = [#tpu.dimension_semantics<parallel>], iteration_bounds = array<i64: 2>, scalar_prefetch = 0 : i64, scratch_operands = 5 : i64, tpu.core_type = #tpu.core_type<tc>, window_params = [{transform_indices = @transform_0, window_bounds = array<i64: 4, 32, 128>}, {pipeline_mode = #tpu.pipeline_mode<synchronous>, transform_indices = @transform_1, window_bounds = array<i64: 32, 1>}, {pipeline_mode = #tpu.pipeline_mode<synchronous>, transform_indices = @transform_2, window_bounds = array<i64: 32, 1>}, {pipeline_mode = #tpu.pipeline_mode<synchronous>, transform_indices = @transform_3, window_bounds = array<i64: 96, 32>}, {pipeline_mode = #tpu.pipeline_mode<synchronous>, transform_indices = @transform_4, window_bounds = array<i64: 96, 1>}, {pipeline_mode = #tpu.pipeline_mode<synchronous>, transform_indices = @transform_5, window_bounds = array<i64: 32, 32>}, {pipeline_mode = #tpu.pipeline_mode<synchronous>, transform_indices = @transform_6, window_bounds = array<i64: 32, 1>}, {transform_indices = @transform_7, window_bounds = array<i64: 4, 32, 128>}]} {
    %c0 = arith.constant 0 : index
    %c0_0 = arith.constant 0 : index
    %0 = vector.load %arg2[%c0, %c0_0] : memref<32x1xf32, #tpu.memory_space<vmem>>, vector<32x1xf32>
    %c0_1 = arith.constant 0 : index
    %c0_2 = arith.constant 0 : index
    %1 = vector.load %arg3[%c0_1, %c0_2] : memref<32x1xf32, #tpu.memory_space<vmem>>, vector<32x1xf32>
    %c0_3 = arith.constant 0 : index
    %c0_4 = arith.constant 0 : index
    %c0_5 = arith.constant 0 : index
    %2 = vector.load %arg1[%c0_3, %c0_4, %c0_5] : memref<4x32x128xf32, #tpu.memory_space<vmem>>, vector<4x32x128xf32>
    %cst = arith.constant dense<0.000000e+00> : vector<4x128xf32>
    %3 = vector.multi_reduction <add>, %2, %cst [1] : vector<4x32x128xf32> to vector<4x128xf32>
    %4 = vector.shape_cast %3 : vector<4x128xf32> to vector<4x1x128xf32>
    %cst_6 = arith.constant 3.200000e+01 : f32
    %5 = vector.broadcast %cst_6 : f32 to vector<4x1x128xf32>
    %6 = arith.divf %4, %5 : vector<4x1x128xf32>
    %7 = vector.broadcast %6 : vector<4x1x128xf32> to vector<4x32x128xf32>
    %8 = arith.subf %2, %7 : vector<4x32x128xf32>
    %9 = arith.mulf %8, %8 : vector<4x32x128xf32>
    %cst_7 = arith.constant dense<0.000000e+00> : vector<4x128xf32>
    %10 = vector.multi_reduction <add>, %9, %cst_7 [1] : vector<4x32x128xf32> to vector<4x128xf32>
    %11 = vector.shape_cast %10 : vector<4x128xf32> to vector<4x1x128xf32>
    %cst_8 = arith.constant 3.200000e+01 : f32
    %12 = vector.broadcast %cst_8 : f32 to vector<4x1x128xf32>
    %13 = arith.divf %11, %12 : vector<4x1x128xf32>
    %cst_9 = arith.constant 9.99999974E-6 : f32
    %14 = vector.broadcast %cst_9 : f32 to vector<4x1x128xf32>
    %15 = arith.addf %13, %14 : vector<4x1x128xf32>
    %16 = math.rsqrt %15 : vector<4x1x128xf32>
    %17 = vector.broadcast %16 : vector<4x1x128xf32> to vector<4x32x128xf32>
    %18 = arith.mulf %8, %17 : vector<4x32x128xf32>
    %19 = vector.shape_cast %0 : vector<32x1xf32> to vector<1x32x1xf32>
    %20 = vector.broadcast %19 : vector<1x32x1xf32> to vector<4x32x128xf32>
    %21 = arith.mulf %18, %20 : vector<4x32x128xf32>
    %22 = vector.shape_cast %1 : vector<32x1xf32> to vector<1x32x1xf32>
    %23 = vector.broadcast %22 : vector<1x32x1xf32> to vector<4x32x128xf32>
    %24 = arith.addf %21, %23 : vector<4x32x128xf32>
    %25 = vector.extract_strided_slice %24 {offsets = [0, 0, 0], sizes = [1, 32, 128], strides = [1, 1, 1]} : vector<4x32x128xf32> to vector<1x32x128xf32>
    %26 = vector.shape_cast %25 : vector<1x32x128xf32> to vector<32x128xf32>
    %27 = arith.truncf %26 : vector<32x128xf32> to vector<32x128xbf16>
    %c0_10 = arith.constant 0 : index
    %c0_11 = arith.constant 0 : index
    %28 = vector.load %arg9[%c0_10, %c0_11] : memref<32x512xbf16, #tpu.memory_space<vmem>>, vector<32x128xbf16>
    tpu.vector_store %arg9[%c0_10, %c0_11], %27 {strides = array<i32>} : memref<32x512xbf16, #tpu.memory_space<vmem>>, vector<32x128xbf16>,
    %29 = vector.extract_strided_slice %24 {offsets = [1, 0, 0], sizes = [1, 32, 128], strides = [1, 1, 1]} : vector<4x32x128xf32> to vector<1x32x128xf32>
    %30 = vector.shape_cast %29 : vector<1x32x128xf32> to vector<32x128xf32>
    %31 = arith.truncf %30 : vector<32x128xf32> to vector<32x128xbf16>
    %c0_12 = arith.constant 0 : index
    %c128 = arith.constant 128 : index
    %32 = vector.load %arg9[%c0_12, %c128] : memref<32x512xbf16, #tpu.memory_space<vmem>>, vector<32x128xbf16>
    tpu.vector_store %arg9[%c0_12, %c128], %31 {strides = array<i32>} : memref<32x512xbf16, #tpu.memory_space<vmem>>, vector<32x128xbf16>,
    %33 = vector.extract_strided_slice %24 {offsets = [2, 0, 0], sizes = [1, 32, 128], strides = [1, 1, 1]} : vector<4x32x128xf32> to vector<1x32x128xf32>
    %34 = vector.shape_cast %33 : vector<1x32x128xf32> to vector<32x128xf32>
    %35 = arith.truncf %34 : vector<32x128xf32> to vector<32x128xbf16>
    %c0_13 = arith.constant 0 : index
    %c256 = arith.constant 256 : index
    %36 = vector.load %arg9[%c0_13, %c256] : memref<32x512xbf16, #tpu.memory_space<vmem>>, vector<32x128xbf16>
    tpu.vector_store %arg9[%c0_13, %c256], %35 {strides = array<i32>} : memref<32x512xbf16, #tpu.memory_space<vmem>>, vector<32x128xbf16>,
    %37 = vector.extract_strided_slice %24 {offsets = [3, 0, 0], sizes = [1, 32, 128], strides = [1, 1, 1]} : vector<4x32x128xf32> to vector<1x32x128xf32>
    %38 = vector.shape_cast %37 : vector<1x32x128xf32> to vector<32x128xf32>
    %39 = arith.truncf %38 : vector<32x128xf32> to vector<32x128xbf16>
    %c0_14 = arith.constant 0 : index
    %c384 = arith.constant 384 : index
    %40 = vector.load %arg9[%c0_14, %c384] : memref<32x512xbf16, #tpu.memory_space<vmem>>, vector<32x128xbf16>
    tpu.vector_store %arg9[%c0_14, %c384], %39 {strides = array<i32>} : memref<32x512xbf16, #tpu.memory_space<vmem>>, vector<32x128xbf16>,
    %c0_15 = arith.constant 0 : index
    %c0_16 = arith.constant 0 : index
    %41 = vector.load %arg4[%c0_15, %c0_16] : memref<96x32xbf16, #tpu.memory_space<vmem>>, vector<96x32xbf16>
    %c0_17 = arith.constant 0 : index
    %c0_18 = arith.constant 0 : index
    %42 = vector.load %arg9[%c0_17, %c0_18] : memref<32x512xbf16, #tpu.memory_space<vmem>>, vector<32x512xbf16>
    %cst_19 = arith.constant dense<0.000000e+00> : vector<96x512xf32>
    %43 = tpu.matmul %41, %42, %cst_19 {dimension_numbers = #tpu.dot_dimension_numbers<[1], [0], [0], [1], [0, 0, 1, 1], [], []>} : vector<96x32xbf16>, vector<32x512xbf16>, vector<96x512xf32> -> vector<96x512xf32>
    %c0_20 = arith.constant 0 : index
    %c0_21 = arith.constant 0 : index
    %44 = vector.load %arg5[%c0_20, %c0_21] : memref<96x1xf32, #tpu.memory_space<vmem>>, vector<96x1xf32>
    %45 = vector.broadcast %44 : vector<96x1xf32> to vector<96x512xf32>
    %46 = arith.addf %43, %45 : vector<96x512xf32>
    %47 = vector.extract_strided_slice %46 {offsets = [0, 0], sizes = [32, 512], strides = [1, 1]} : vector<96x512xf32> to vector<32x512xf32>
    %cst_22 = arith.constant 0.353553385 : f32
    %48 = vector.broadcast %cst_22 : f32 to vector<32x512xf32>
    %49 = arith.mulf %47, %48 : vector<32x512xf32>
    %50 = vector.shape_cast %49 : vector<32x512xf32> to vector<4x8x512xf32>
    %51 = arith.truncf %50 : vector<4x8x512xf32> to vector<4x8x512xbf16>
    %c0_23 = arith.constant 0 : index
    %c0_24 = arith.constant 0 : index
    %c0_25 = arith.constant 0 : index
    %52 = vector.load %arg10[%c0_23, %c0_24, %c0_25] : memref<4x8x512xbf16, #tpu.memory_space<vmem>>, vector<4x8x512xbf16>
    tpu.vector_store %arg10[%c0_23, %c0_24, %c0_25], %51 {strides = array<i32>} : memref<4x8x512xbf16, #tpu.memory_space<vmem>>, vector<4x8x512xbf16>,
    %53 = vector.extract_strided_slice %46 {offsets = [32, 0], sizes = [32, 512], strides = [1, 1]} : vector<96x512xf32> to vector<32x512xf32>
    %54 = vector.shape_cast %53 : vector<32x512xf32> to vector<4x8x512xf32>
    %55 = arith.truncf %54 : vector<4x8x512xf32> to vector<4x8x512xbf16>
    %c0_26 = arith.constant 0 : index
    %c0_27 = arith.constant 0 : index
    %c0_28 = arith.constant 0 : index
    %56 = vector.load %arg11[%c0_26, %c0_27, %c0_28] : memref<4x8x512xbf16, #tpu.memory_space<vmem>>, vector<4x8x512xbf16>
    tpu.vector_store %arg11[%c0_26, %c0_27, %c0_28], %55 {strides = array<i32>} : memref<4x8x512xbf16, #tpu.memory_space<vmem>>, vector<4x8x512xbf16>,
    %57 = vector.extract_strided_slice %46 {offsets = [64, 0], sizes = [32, 512], strides = [1, 1]} : vector<96x512xf32> to vector<32x512xf32>
    %58 = vector.shape_cast %57 : vector<32x512xf32> to vector<4x8x512xf32>
    %59 = arith.truncf %58 : vector<4x8x512xf32> to vector<4x8x512xbf16>
    %c0_29 = arith.constant 0 : index
    %c0_30 = arith.constant 0 : index
    %c0_31 = arith.constant 0 : index
    %60 = vector.load %arg12[%c0_29, %c0_30, %c0_31] : memref<4x8x512xbf16, #tpu.memory_space<vmem>>, vector<4x8x512xbf16>
    tpu.vector_store %arg12[%c0_29, %c0_30, %c0_31], %59 {strides = array<i32>} : memref<4x8x512xbf16, #tpu.memory_space<vmem>>, vector<4x8x512xbf16>,
    %c0_i32 = arith.constant 0 : i32
    %c4_i32 = arith.constant 4 : i32
    %61 = arith.addi %c0_i32, %c4_i32 : i32
    %c1_i32 = arith.constant 1 : i32
    scf.for %arg14 = %c0_i32 to %61 step %c1_i32  : i32 {
      %c128_i32 = arith.constant 128 : i32
      %96 = arith.muli %arg14, %c128_i32 : i32
      %97 = tpu.assume_multiple %96, 128 : i32
      %c0_61 = arith.constant 0 : index
      %c0_62 = arith.constant 0 : index
      %98 = arith.index_cast %97 : i32 to index
      %99 = vector.load %arg10[%c0_61, %c0_62, %98] : memref<4x8x512xbf16, #tpu.memory_space<vmem>>, vector<4x8x128xbf16>
      %c0_63 = arith.constant 0 : index
      %c0_64 = arith.constant 0 : index
      %100 = arith.index_cast %97 : i32 to index
      %101 = vector.load %arg11[%c0_63, %c0_64, %100] : memref<4x8x512xbf16, #tpu.memory_space<vmem>>, vector<4x8x128xbf16>
      %c0_65 = arith.constant 0 : index
      %c0_66 = arith.constant 0 : index
      %102 = arith.index_cast %97 : i32 to index
      %103 = vector.load %arg12[%c0_65, %c0_66, %102] : memref<4x8x512xbf16, #tpu.memory_space<vmem>>, vector<4x8x128xbf16>
      %cst_67 = arith.constant dense<0.000000e+00> : vector<4x128x128xf32>
      %104 = tpu.matmul %99, %101, %cst_67 {dimension_numbers = #tpu.dot_dimension_numbers<[1], [1], [2], [2], [0, 0, 0, 2, 1, 2], [0], [0]>} : vector<4x8x128xbf16>, vector<4x8x128xbf16>, vector<4x128x128xf32> -> vector<4x128x128xf32>
      %cst_68 = arith.constant dense<0xFF800000> : vector<4x128xf32>
      %105 = vector.multi_reduction <maximumf>, %104, %cst_68 [2] : vector<4x128x128xf32> to vector<4x128xf32>
      %106 = vector.shape_cast %105 : vector<4x128xf32> to vector<4x128x1xf32>
      %107 = vector.broadcast %106 : vector<4x128x1xf32> to vector<4x128x128xf32>
      %108 = arith.subf %104, %107 : vector<4x128x128xf32>
      %109 = math.exp %108 : vector<4x128x128xf32>
      %cst_69 = arith.constant dense<0.000000e+00> : vector<4x128xf32>
      %110 = vector.multi_reduction <add>, %109, %cst_69 [2] : vector<4x128x128xf32> to vector<4x128xf32>
      %111 = vector.shape_cast %110 : vector<4x128xf32> to vector<4x128x1xf32>
      %112 = tpu.reciprocal %111 {approx = true} : vector<4x128x1xf32> -> vector<4x128x1xf32>
      %113 = vector.broadcast %112 : vector<4x128x1xf32> to vector<4x128x128xf32>
      %114 = arith.mulf %109, %113 : vector<4x128x128xf32>
      %115 = arith.truncf %114 : vector<4x128x128xf32> to vector<4x128x128xbf16>
      %cst_70 = arith.constant dense<0.000000e+00> : vector<4x8x128xf32>
      %116 = tpu.matmul %103, %115, %cst_70 {dimension_numbers = #tpu.dot_dimension_numbers<[2], [2], [1], [1], [0, 0, 0, 1, 1, 1], [0], [0]>} : vector<4x8x128xbf16>, vector<4x128x128xbf16>, vector<4x8x128xf32> -> vector<4x8x128xf32>
      %117 = vector.shape_cast %116 : vector<4x8x128xf32> to vector<32x128xf32>
      %118 = arith.truncf %117 : vector<32x128xf32> to vector<32x128xbf16>
      %c0_71 = arith.constant 0 : index
      %119 = arith.index_cast %97 : i32 to index
      %120 = vector.load %arg13[%c0_71, %119] : memref<32x512xbf16, #tpu.memory_space<vmem>>, vector<32x128xbf16>
      tpu.vector_store %arg13[%c0_71, %119], %118 {strides = array<i32>} : memref<32x512xbf16, #tpu.memory_space<vmem>>, vector<32x128xbf16>,
    }
    %c4_i32_32 = arith.constant 4 : i32
    %c0_33 = arith.constant 0 : index
    %c0_34 = arith.constant 0 : index
    %62 = vector.load %arg6[%c0_33, %c0_34] : memref<32x32xbf16, #tpu.memory_space<vmem>>, vector<32x32xbf16>
    %c0_35 = arith.constant 0 : index
    %c0_36 = arith.constant 0 : index
    %63 = vector.load %arg13[%c0_35, %c0_36] : memref<32x512xbf16, #tpu.memory_space<vmem>>, vector<32x512xbf16>
    %cst_37 = arith.constant dense<0.000000e+00> : vector<32x512xf32>
    %64 = tpu.matmul %62, %63, %cst_37 {dimension_numbers = #tpu.dot_dimension_numbers<[1], [0], [0], [1], [0, 0, 1, 1], [], []>} : vector<32x32xbf16>, vector<32x512xbf16>, vector<32x512xf32> -> vector<32x512xf32>
    %c0_38 = arith.constant 0 : index
    %c0_39 = arith.constant 0 : index
    %65 = vector.load %arg7[%c0_38, %c0_39] : memref<32x1xf32, #tpu.memory_space<vmem>>, vector<32x1xf32>
    %66 = vector.broadcast %65 : vector<32x1xf32> to vector<32x512xf32>
    %67 = arith.addf %64, %66 : vector<32x512xf32>
    %c0_40 = arith.constant 0 : index
    %c0_41 = arith.constant 0 : index
    %c0_42 = arith.constant 0 : index
    %68 = vector.load %arg1[%c0_40, %c0_41, %c0_42] : memref<4x32x128xf32, #tpu.memory_space<vmem>>, vector<1x32x128xf32>
    %69 = vector.shape_cast %68 : vector<1x32x128xf32> to vector<32x128xf32>
    %70 = vector.extract_strided_slice %67 {offsets = [0, 0], sizes = [32, 128], strides = [1, 1]} : vector<32x512xf32> to vector<32x128xf32>
    %71 = arith.addf %69, %70 : vector<32x128xf32>
    %c0_43 = arith.constant 0 : index
    %c0_44 = arith.constant 0 : index
    %c0_45 = arith.constant 0 : index
    %72 = vector.load %arg8[%c0_43, %c0_44, %c0_45] : memref<4x32x128xf32, #tpu.memory_space<vmem>>, vector<1x32x128xf32>
    %73 = vector.shape_cast %72 : vector<1x32x128xf32> to vector<32x128xf32>
    %74 = vector.shape_cast %71 : vector<32x128xf32> to vector<1x32x128xf32>
    tpu.vector_store %arg8[%c0_43, %c0_44, %c0_45], %74 {strides = array<i32>} : memref<4x32x128xf32, #tpu.memory_space<vmem>>, vector<1x32x128xf32>,
    %c1 = arith.constant 1 : index
    %c0_46 = arith.constant 0 : index
    %c0_47 = arith.constant 0 : index
    %75 = vector.load %arg1[%c1, %c0_46, %c0_47] : memref<4x32x128xf32, #tpu.memory_space<vmem>>, vector<1x32x128xf32>
    %76 = vector.shape_cast %75 : vector<1x32x128xf32> to vector<32x128xf32>
    %77 = vector.extract_strided_slice %67 {offsets = [0, 128], sizes = [32, 128], strides = [1, 1]} : vector<32x512xf32> to vector<32x128xf32>
    %78 = arith.addf %76, %77 : vector<32x128xf32>
    %c1_48 = arith.constant 1 : index
    %c0_49 = arith.constant 0 : index
    %c0_50 = arith.constant 0 : index
    %79 = vector.load %arg8[%c1_48, %c0_49, %c0_50] : memref<4x32x128xf32, #tpu.memory_space<vmem>>, vector<1x32x128xf32>
    %80 = vector.shape_cast %79 : vector<1x32x128xf32> to vector<32x128xf32>
    %81 = vector.shape_cast %78 : vector<32x128xf32> to vector<1x32x128xf32>
    tpu.vector_store %arg8[%c1_48, %c0_49, %c0_50], %81 {strides = array<i32>} : memref<4x32x128xf32, #tpu.memory_space<vmem>>, vector<1x32x128xf32>,
    %c2 = arith.constant 2 : index
    %c0_51 = arith.constant 0 : index
    %c0_52 = arith.constant 0 : index
    %82 = vector.load %arg1[%c2, %c0_51, %c0_52] : memref<4x32x128xf32, #tpu.memory_space<vmem>>, vector<1x32x128xf32>
    %83 = vector.shape_cast %82 : vector<1x32x128xf32> to vector<32x128xf32>
    %84 = vector.extract_strided_slice %67 {offsets = [0, 256], sizes = [32, 128], strides = [1, 1]} : vector<32x512xf32> to vector<32x128xf32>
    %85 = arith.addf %83, %84 : vector<32x128xf32>
    %c2_53 = arith.constant 2 : index
    %c0_54 = arith.constant 0 : index
    %c0_55 = arith.constant 0 : index
    %86 = vector.load %arg8[%c2_53, %c0_54, %c0_55] : memref<4x32x128xf32, #tpu.memory_space<vmem>>, vector<1x32x128xf32>
    %87 = vector.shape_cast %86 : vector<1x32x128xf32> to vector<32x128xf32>
    %88 = vector.shape_cast %85 : vector<32x128xf32> to vector<1x32x128xf32>
    tpu.vector_store %arg8[%c2_53, %c0_54, %c0_55], %88 {strides = array<i32>} : memref<4x32x128xf32, #tpu.memory_space<vmem>>, vector<1x32x128xf32>,
    %c3 = arith.constant 3 : index
    %c0_56 = arith.constant 0 : index
    %c0_57 = arith.constant 0 : index
    %89 = vector.load %arg1[%c3, %c0_56, %c0_57] : memref<4x32x128xf32, #tpu.memory_space<vmem>>, vector<1x32x128xf32>
    %90 = vector.shape_cast %89 : vector<1x32x128xf32> to vector<32x128xf32>
    %91 = vector.extract_strided_slice %67 {offsets = [0, 384], sizes = [32, 128], strides = [1, 1]} : vector<32x512xf32> to vector<32x128xf32>
    %92 = arith.addf %90, %91 : vector<32x128xf32>
    %c3_58 = arith.constant 3 : index
    %c0_59 = arith.constant 0 : index
    %c0_60 = arith.constant 0 : index
    %93 = vector.load %arg8[%c3_58, %c0_59, %c0_60] : memref<4x32x128xf32, #tpu.memory_space<vmem>>, vector<1x32x128xf32>
    %94 = vector.shape_cast %93 : vector<1x32x128xf32> to vector<32x128xf32>
    %95 = vector.shape_cast %92 : vector<32x128xf32> to vector<1x32x128xf32>
    tpu.vector_store %arg8[%c3_58, %c0_59, %c0_60], %95 {strides = array<i32>} : memref<4x32x128xf32, #tpu.memory_space<vmem>>, vector<1x32x128xf32>,
    return
  }
  func.func @transform_0(%arg0: i32) -> (i32, i32, i32) {
    %c0_i32 = arith.constant 0 : i32
    %c0_i32_0 = arith.constant 0 : i32
    %c0_i32_1 = arith.constant 0 : i32
    return %arg0, %c0_i32, %c0_i32_0 : i32, i32, i32
  }
  func.func @transform_1(%arg0: i32) -> (i32, i32) {
    %c0_i32 = arith.constant 0 : i32
    %c0_i32_0 = arith.constant 0 : i32
    %c0_i32_1 = arith.constant 0 : i32
    return %c0_i32, %c0_i32_0 : i32, i32
  }
  func.func @transform_2(%arg0: i32) -> (i32, i32) {
    %c0_i32 = arith.constant 0 : i32
    %c0_i32_0 = arith.constant 0 : i32
    %c0_i32_1 = arith.constant 0 : i32
    return %c0_i32, %c0_i32_0 : i32, i32
  }
  func.func @transform_3(%arg0: i32) -> (i32, i32) {
    %c0_i32 = arith.constant 0 : i32
    %c0_i32_0 = arith.constant 0 : i32
    %c0_i32_1 = arith.constant 0 : i32
    return %c0_i32, %c0_i32_0 : i32, i32
  }
  func.func @transform_4(%arg0: i32) -> (i32, i32) {
    %c0_i32 = arith.constant 0 : i32
    %c0_i32_0 = arith.constant 0 : i32
    %c0_i32_1 = arith.constant 0 : i32
    return %c0_i32, %c0_i32_0 : i32, i32
  }
  func.func @transform_5(%arg0: i32) -> (i32, i32) {
    %c0_i32 = arith.constant 0 : i32
    %c0_i32_0 = arith.constant 0 : i32
    %c0_i32_1 = arith.constant 0 : i32
    return %c0_i32, %c0_i32_0 : i32, i32
  }
  func.func @transform_6(%arg0: i32) -> (i32, i32) {
    %c0_i32 = arith.constant 0 : i32
    %c0_i32_0 = arith.constant 0 : i32
    %c0_i32_1 = arith.constant 0 : i32
    return %c0_i32, %c0_i32_0 : i32, i32
  }
  func.func @transform_7(%arg0: i32) -> (i32, i32, i32) {
    %c0_i32 = arith.constant 0 : i32
    %c0_i32_0 = arith.constant 0 : i32
    %c0_i32_1 = arith.constant 0 : i32
    return %arg0, %c0_i32, %c0_i32_0 : i32, i32, i32
  }
}

</mosaic_0001>

<llo_original>
// kernel: tpu_custom_call.1
$region0: #{tpu_custom_call.1}
  #allocation0 [shape = 'u32[]', space=smem, size = 0x4, offset = 0x4, fixed_abs, tag = 'smem constant byte address 0x4 - core index']
  #allocation1 [shape = 'u32[72,128]{1,0:T(1,128)}', space=vmem, size = 0x9000, scoped, tag = 'internal scratch']
  #allocation2 [shape = 'bf16[32,512]{1,0:T(8,128)(2,1)}', space=vmem, size = 0x8000, scoped, tag = 'scratch operand']
  #allocation3 [shape = 'bf16[4,8,512]{2,1,0:T(8,128)(2,1)}', space=vmem, size = 0x8000, scoped, tag = 'scratch operand']
  #allocation4 [shape = 'bf16[4,8,512]{2,1,0:T(8,128)(2,1)}', space=vmem, size = 0x8000, scoped, tag = 'scratch operand']
  #allocation5 [shape = 'bf16[4,8,512]{2,1,0:T(8,128)(2,1)}', space=vmem, size = 0x8000, scoped, tag = 'scratch operand']
  #allocation6 [shape = 'bf16[32,512]{1,0:T(8,128)(2,1)}', space=vmem, size = 0x8000, scoped, tag = 'scratch operand']
  %s0 = inlined_call_operand.hbm [shape: f32[8,32,128], index: 0, kind: input, shape index: {}]
  %s1 = inlined_call_operand.vmem [shape: f32[32,1], index: 1, kind: input, shape index: {}]
  %s2 = inlined_call_operand.vmem [shape: f32[32,1], index: 2, kind: input, shape index: {}]
  %s3 = inlined_call_operand.vmem [shape: bf16[96,32], index: 3, kind: input, shape index: {}]
  %s4 = inlined_call_operand.vmem [shape: f32[96,1], index: 4, kind: input, shape index: {}]
  %s5 = inlined_call_operand.vmem [shape: bf16[32,32], index: 5, kind: input, shape index: {}]
  %s6 = inlined_call_operand.vmem [shape: f32[32,1], index: 6, kind: input, shape index: {}]
  %s7 = inlined_call_operand.hbm [shape: f32[8,32,128], index: 7, kind: output, shape index: {}]
  %s8 = sld [smem:[#allocation0]]
  $region72: #{tpu_custom_call.1} parent=0
    _
  %s10 = ssub.s32 1, %s8
  %s11 = scalar_select 0, %s10, %s8
  $region1: #{tpu_custom_call.1} parent=0
    #allocation7 [shape = 'u8[131072]{0}', space=vmem, size = 0x20000, scoped, tag = 'input window, operand 0']
    #allocation8 [shape = 's32[2]{0}', space=sflag, size = 0x8, scoped, tag = 'scoped memory for tpu_custom_call.1']
    #allocation9 [shape = 's32[2]{0}', space=sflag, size = 0x8, scoped, tag = 'scoped memory for tpu_custom_call.1']
    #allocation10 [shape = 'u8[131072]{0}', space=vmem, size = 0x20000, scoped, tag = 'output window, operand 0']
    %12 = vsyncpa [#allocation8], 0
    %s13 = scalar_lea.sflag [#allocation8], 1
    %14 = vsyncpa %s13, 0
    %15 = vsyncpa [#allocation9], 0
    %s16 = scalar_lea.sflag [#allocation9], 1
    %17 = vsyncpa %s16, 0
    loop: start=0, step=1, limit=4
    $region2: #{tpu_custom_call.1} parent=1 // loop_pre_header
      _
    $region3: #{tpu_custom_call.1} parent=1 // loop_header
      %s19 = sphi 0, %s23
      %p20 = scmp.ge.s32.totalorder %s19, 4
      %s29 = sphi 0, %s31
      %s32 = sphi 0, %s29
      %s33 = sphi 0, %s32
      %s49 = sphi 0, %s33
      %s53 = sphi 0, %s53
      %s55 = sphi 0, %s53
      %s56 = sphi 0, %s55
      %s70 = sphi 0, %s56
      %s74 = sphi 0, %s74
      %s76 = sphi 0, %s74
      %s77 = sphi 0, %s76
      %s91 = sphi 0, %s77
      %s95 = sphi 0, %s95
      %s97 = sphi 0, %s95
      %s98 = sphi 0, %s97
      %s112 = sphi 0, %s98
      %s116 = sphi 0, %s116
      %s118 = sphi 0, %s116
      %s119 = sphi 0, %s118
      %s133 = sphi 0, %s119
      %s137 = sphi 0, %s137
      %s139 = sphi 0, %s137
      %s140 = sphi 0, %s139
      %s154 = sphi 0, %s140
      %s158 = sphi 0, %s158
      %s160 = sphi 0, %s158
      %s161 = sphi 0, %s160
      %s175 = sphi 0, %s161
      %s181 = sphi 0, %s183
      %s184 = sphi 0, %s181
      %s185 = sphi 0, %s184
      %s201 = sphi 0, %s185
    $region4: #{tpu_custom_call.1} parent=1 // loop_header_branch
      %22 = sbr.rel (%p20) target = $region8
    $region5: #{tpu_custom_call.1} parent=1 // loop_body
      %s24 = ssub.s32 %s19, 1
      %s25 = ssub.s32 %s19, 2
      %s26 = sadd.s32 %s19, 1
      %s27 = ssub.s32 %s19, %s26
      %p28 = scmp.eq.s32.totalorder %s27, 0
      %s30 = sadd.s32 %s29, 1
      %s31 = scalar_select %p28, %s29, %s30
      %p34 = pneg %p28
      %p35 = scmp.eq.s32.totalorder %s19, 1
      %p36 = por %p34, %p35
      %p37 = scmp.ne.s32.totalorder %s29, %s32
      %p38 = scmp.eq.s32.totalorder %s19, 0
      %p39 = por %p37, %p38
      %p40 = scmp.ne.s32.totalorder %s29, %s32
      %p41 = scmp.eq.s32.totalorder %s24, 1
      %p42 = por %p40, %p41
      %p43 = scmp.ne.s32.totalorder %s32, %s33
      %p44 = scmp.eq.s32.totalorder %s24, 0
      %p45 = por %p43, %p44
      %p46 = scmp.ne.s32.totalorder %s32, %s33
      %p47 = scmp.eq.s32.totalorder %s25, 1
      %p48 = por %p46, %p47
      %p50 = scmp.ne.s32.totalorder %s33, %s49
      %p51 = scmp.eq.s32.totalorder %s25, 0
      %p52 = por %p50, %p51
      %s54 = sadd.s32 %s53, 1
      %p57 = scmp.eq.s32.totalorder %s19, 1
      %p58 = scmp.ne.s32.totalorder %s53, %s55
      %p59 = scmp.eq.s32.totalorder %s19, 0
      %p60 = por %p58, %p59
      %p61 = scmp.ne.s32.totalorder %s53, %s55
      %p62 = scmp.eq.s32.totalorder %s24, 1
      %p63 = por %p61, %p62
      %p64 = scmp.ne.s32.totalorder %s55, %s56
      %p65 = scmp.eq.s32.totalorder %s24, 0
      %p66 = por %p64, %p65
      %p67 = scmp.ne.s32.totalorder %s55, %s56
      %p68 = scmp.eq.s32.totalorder %s25, 1
      %p69 = por %p67, %p68
      %p71 = scmp.ne.s32.totalorder %s56, %s70
      %p72 = scmp.eq.s32.totalorder %s25, 0
      %p73 = por %p71, %p72
      %s75 = sadd.s32 %s74, 1
      %p78 = scmp.eq.s32.totalorder %s19, 1
      %p79 = scmp.ne.s32.totalorder %s74, %s76
      %p80 = scmp.eq.s32.totalorder %s19, 0
      %p81 = por %p79, %p80
      %p82 = scmp.ne.s32.totalorder %s74, %s76
      %p83 = scmp.eq.s32.totalorder %s24, 1
      %p84 = por %p82, %p83
      %p85 = scmp.ne.s32.totalorder %s76, %s77
      %p86 = scmp.eq.s32.totalorder %s24, 0
      %p87 = por %p85, %p86
      %p88 = scmp.ne.s32.totalorder %s76, %s77
      %p89 = scmp.eq.s32.totalorder %s25, 1
      %p90 = por %p88, %p89
      %p92 = scmp.ne.s32.totalorder %s77, %s91
      %p93 = scmp.eq.s32.totalorder %s25, 0
      %p94 = por %p92, %p93
      %s96 = sadd.s32 %s95, 1
      %p99 = scmp.eq.s32.totalorder %s19, 1
      %p100 = scmp.ne.s32.totalorder %s95, %s97
      %p101 = scmp.eq.s32.totalorder %s19, 0
      %p102 = por %p100, %p101
      %p103 = scmp.ne.s32.totalorder %s95, %s97
      %p104 = scmp.eq.s32.totalorder %s24, 1
      %p105 = por %p103, %p104
      %p106 = scmp.ne.s32.totalorder %s97, %s98
      %p107 = scmp.eq.s32.totalorder %s24, 0
      %p108 = por %p106, %p107
      %p109 = scmp.ne.s32.totalorder %s97, %s98
      %p110 = scmp.eq.s32.totalorder %s25, 1
      %p111 = por %p109, %p110
      %p113 = scmp.ne.s32.totalorder %s98, %s112
      %p114 = scmp.eq.s32.totalorder %s25, 0
      %p115 = por %p113, %p114
      %s117 = sadd.s32 %s116, 1
      %p120 = scmp.eq.s32.totalorder %s19, 1
      %p121 = scmp.ne.s32.totalorder %s116, %s118
      %p122 = scmp.eq.s32.totalorder %s19, 0
      %p123 = por %p121, %p122
      %p124 = scmp.ne.s32.totalorder %s116, %s118
      %p125 = scmp.eq.s32.totalorder %s24, 1
      %p126 = por %p124, %p125
      %p127 = scmp.ne.s32.totalorder %s118, %s119
      %p128 = scmp.eq.s32.totalorder %s24, 0
      %p129 = por %p127, %p128
      %p130 = scmp.ne.s32.totalorder %s118, %s119
      %p131 = scmp.eq.s32.totalorder %s25, 1
      %p132 = por %p130, %p131
      %p134 = scmp.ne.s32.totalorder %s119, %s133
      %p135 = scmp.eq.s32.totalorder %s25, 0
      %p136 = por %p134, %p135
      %s138 = sadd.s32 %s137, 1
      %p141 = scmp.eq.s32.totalorder %s19, 1
      %p142 = scmp.ne.s32.totalorder %s137, %s139
      %p143 = scmp.eq.s32.totalorder %s19, 0
      %p144 = por %p142, %p143
      %p145 = scmp.ne.s32.totalorder %s137, %s139
      %p146 = scmp.eq.s32.totalorder %s24, 1
      %p147 = por %p145, %p146
      %p148 = scmp.ne.s32.totalorder %s139, %s140
      %p149 = scmp.eq.s32.totalorder %s24, 0
      %p150 = por %p148, %p149
      %p151 = scmp.ne.s32.totalorder %s139, %s140
      %p152 = scmp.eq.s32.totalorder %s25, 1
      %p153 = por %p151, %p152
      %p155 = scmp.ne.s32.totalorder %s140, %s154
      %p156 = scmp.eq.s32.totalorder %s25, 0
      %p157 = por %p155, %p156
      %s159 = sadd.s32 %s158, 1
      %p162 = scmp.eq.s32.totalorder %s19, 1
      %p163 = scmp.ne.s32.totalorder %s158, %s160
      %p164 = scmp.eq.s32.totalorder %s19, 0
      %p165 = por %p163, %p164
      %p166 = scmp.ne.s32.totalorder %s158, %s160
      %p167 = scmp.eq.s32.totalorder %s24, 1
      %p168 = por %p166, %p167
      %p169 = scmp.ne.s32.totalorder %s160, %s161
      %p170 = scmp.eq.s32.totalorder %s24, 0
      %p171 = por %p169, %p170
      %p172 = scmp.ne.s32.totalorder %s160, %s161
      %p173 = scmp.eq.s32.totalorder %s25, 1
      %p174 = por %p172, %p173
      %p176 = scmp.ne.s32.totalorder %s161, %s175
      %p177 = scmp.eq.s32.totalorder %s25, 0
      %p178 = por %p176, %p177
      %s179 = ssub.s32 %s19, %s26
      %p180 = scmp.eq.s32.totalorder %s179, 0
      %s182 = sadd.s32 %s181, 1
      %s183 = scalar_select %p180, %s181, %s182
      %p186 = pneg %p180
      %p187 = scmp.eq.s32.totalorder %s19, 1
      %p188 = por %p186, %p187
      %p189 = scmp.ne.s32.totalorder %s181, %s184
      %p190 = scmp.eq.s32.totalorder %s19, 0
      %p191 = por %p189, %p190
      %p192 = scmp.ne.s32.totalorder %s181, %s184
      %p193 = scmp.eq.s32.totalorder %s24, 1
      %p194 = por %p192, %p193
      %p195 = scmp.ne.s32.totalorder %s184, %s185
      %p196 = scmp.eq.s32.totalorder %s24, 0
      %p197 = por %p195, %p196
      %p198 = scmp.ne.s32.totalorder %s184, %s185
      %p199 = scmp.eq.s32.totalorder %s25, 1
      %p200 = por %p198, %p199
      %p202 = scmp.ne.s32.totalorder %s185, %s201
      %p203 = scmp.eq.s32.totalorder %s25, 0
      %p204 = por %p202, %p203
      %p205 = scmp.le.s32.totalorder 1, %s19
      %p206 = scmp.lt.s32.totalorder %s19, 3
      %p207 = pnand %p205, %p206
      %p208 = pneg %p207
      // Predicated region
      $region9: #{tpu_custom_call.1} parent=5 // pred_check
        _
      $region10: #{tpu_custom_call.1} parent=5 // pred_check_branch
        %210 = sbr.rel (%p207) target = $region12
      $region11: #{tpu_custom_call.1} parent=5 // pred_region
        %s211 = ssub.s32 %s19, 1
        // Predicated region
        $region13: #{tpu_custom_call.1} parent=11 // pred_check
          %p212 = pneg %p66
        $region14: #{tpu_custom_call.1} parent=11 // pred_check_branch
          %214 = sbr.rel (%p212) target = $region16
        $region15: #{tpu_custom_call.1} parent=11 // pred_region
          _
        $region16: #{tpu_custom_call.1} parent=11 // pred_fallthru
          _
        // Predicated region
        $region17: #{tpu_custom_call.1} parent=11 // pred_check
          %p215 = pneg %p87
        $region18: #{tpu_custom_call.1} parent=11 // pred_check_branch
          %217 = sbr.rel (%p215) target = $region20
        $region19: #{tpu_custom_call.1} parent=11 // pred_region
          _
        $region20: #{tpu_custom_call.1} parent=11 // pred_fallthru
          _
        // Predicated region
        $region21: #{tpu_custom_call.1} parent=11 // pred_check
          %p218 = pneg %p108
        $region22: #{tpu_custom_call.1} parent=11 // pred_check_branch
          %220 = sbr.rel (%p218) target = $region24
        $region23: #{tpu_custom_call.1} parent=11 // pred_region
          _
        $region24: #{tpu_custom_call.1} parent=11 // pred_fallthru
          _
        // Predicated region
        $region25: #{tpu_custom_call.1} parent=11 // pred_check
          %p221 = pneg %p129
        $region26: #{tpu_custom_call.1} parent=11 // pred_check_branch
          %223 = sbr.rel (%p221) target = $region28
        $region27: #{tpu_custom_call.1} parent=11 // pred_region
          _
        $region28: #{tpu_custom_call.1} parent=11 // pred_fallthru
          _
        // Predicated region
        $region29: #{tpu_custom_call.1} parent=11 // pred_check
          %p224 = pneg %p150
        $region30: #{tpu_custom_call.1} parent=11 // pred_check_branch
          %226 = sbr.rel (%p224) target = $region32
        $region31: #{tpu_custom_call.1} parent=11 // pred_region
          _
        $region32: #{tpu_custom_call.1} parent=11 // pred_fallthru
          _
        // Predicated region
        $region33: #{tpu_custom_call.1} parent=11 // pred_check
          %p227 = pneg %p171
        $region34: #{tpu_custom_call.1} parent=11 // pred_check_branch
          %229 = sbr.rel (%p227) target = $region36
        $region35: #{tpu_custom_call.1} parent=11 // pred_region
          _
        $region36: #{tpu_custom_call.1} parent=11 // pred_fallthru
          _
      $region12: #{tpu_custom_call.1} parent=5 // pred_fallthru
        _
      %p230 = scmp.lt.s32.totalorder %s19, 2
      // Predicated region
      $region37: #{tpu_custom_call.1} parent=5 // pred_check
        %p231 = pneg %p230
      $region38: #{tpu_custom_call.1} parent=5 // pred_check_branch
        %233 = sbr.rel (%p231) target = $region40
      $region39: #{tpu_custom_call.1} parent=5 // pred_region
        // Predicated region
        $region41: #{tpu_custom_call.1} parent=39 // pred_check
          %p234 = pneg %p39
        $region42: #{tpu_custom_call.1} parent=39 // pred_check_branch
          %236 = sbr.rel (%p234) target = $region44
        $region43: #{tpu_custom_call.1} parent=39 // pred_region
          %s237 = sand.u32 %s29, 1
          %s238 = scalar_lea.sflag [#allocation8], %s237
          %s239 = sand.u32 %s29, 1
          %s240 = smul.addr %s239, 128
          %s241 = scalar_lea.vmem [#allocation7], %s240
          %s242 = smul.u32 4, %s19
          %244 = vsyncadd %s238, 0
          %s245 = smul.addr %s242, 4
          %s246 = smul.addr %s245, 8
          %s247 = scalar_lea.hbm %s0, %s246
          %s248 = sshll.u32 %s247, 4
          %s249 = int_to_ptr.hbm [resolvable:$true] %s248
          %s250 = sshll.u32 %s241, 4
          %s251 = int_to_ptr.vmem [resolvable:$true] %s250
          %256 = dma.hbm_to_vmem [thread:$0]  %s249, 2048, %s251, %s238, 128, 128, 8
        $region44: #{tpu_custom_call.1} parent=39 // pred_fallthru
          _
      $region40: #{tpu_custom_call.1} parent=5 // pred_fallthru
        _
      %p257 = scmp.le.s32.totalorder 1, %s19
      %p258 = scmp.lt.s32.totalorder %s19, 3
      %p259 = pnand %p257, %p258
      %p260 = pneg %p259
      // Predicated region
      $region45: #{tpu_custom_call.1} parent=5 // pred_check
        _
      $region46: #{tpu_custom_call.1} parent=5 // pred_check_branch
        %262 = sbr.rel (%p259) target = $region48
      $region47: #{tpu_custom_call.1} parent=5 // pred_region
        %s263 = ssub.s32 %s19, 1
        %s264 = sand.u32 %s32, 1
        %s265 = scalar_lea.sflag [#allocation8], %s264
        %s266 = sand.u32 %s32, 1
        %s267 = smul.addr %s266, 128
        %s268 = scalar_lea.vmem [#allocation7], %s267
        // Predicated region
        $region49: #{tpu_custom_call.1} parent=47 // pred_check
          %p269 = pneg %p45
        $region50: #{tpu_custom_call.1} parent=47 // pred_check_branch
          %271 = sbr.rel (%p269) target = $region52
        $region51: #{tpu_custom_call.1} parent=47 // pred_region
          %273 = dma.done %s265, 2048
        $region52: #{tpu_custom_call.1} parent=47 // pred_fallthru
          _
        %s274 = sand.u32 %s32, 1
        %s275 = scalar_lea.sflag [#allocation8], %s274
        %s276 = sand.u32 %s32, 1
        %s277 = smul.addr %s276, 128
        %s278 = scalar_lea.vmem [#allocation7], %s277
        %p279 = pneg %p45
        %p280 = pneg %p42
        %p281 = pneg %p66
        %p282 = pneg %p63
        %p283 = pneg %p87
        %p284 = pneg %p84
        %p285 = pneg %p108
        %p286 = pneg %p105
        %p287 = pneg %p129
        %p288 = pneg %p126
        %p289 = pneg %p150
        %p290 = pneg %p147
        %p291 = pneg %p171
        %p292 = pneg %p168
        %p293 = pneg %p197
        %p294 = pneg %p194
        %s295 = sand.u32 %s184, 1
        %s296 = scalar_lea.sflag [#allocation9], %s295
        %s297 = sand.u32 %s184, 1
        %s298 = smul.addr %s297, 128
        %s299 = scalar_lea.vmem [#allocation10], %s298
        %s300 = smul.u32 4, %s24
        %s301 = smul.u32 4, %s24
        %v303 = vld [vmem:[%s1] sm:$0xff]
        %v304 = vld [vmem:[%s1 + $0x8] sm:$0xff]
        %v305 = vld [vmem:[%s1 + $0x10] sm:$0xff]
        %v306 = vld [vmem:[%s1 + $0x18] sm:$0xff]
        %v307 = vld [vmem:[%s2] sm:$0xff]
        %v308 = vld [vmem:[%s2 + $0x8] sm:$0xff]
        %v309 = vld [vmem:[%s2 + $0x10] sm:$0xff]
        %v310 = vld [vmem:[%s2 + $0x18] sm:$0xff]
        %v311 = vld [vmem:[%s268] sm:$0xff]
        %v312 = vld [vmem:[%s268 + $0x8] sm:$0xff]
        %v313 = vld [vmem:[%s268 + $0x10] sm:$0xff]
        %v314 = vld [vmem:[%s268 + $0x18] sm:$0xff]
        %v315 = vld [vmem:[%s268 + $0x20] sm:$0xff]
        %v316 = vld [vmem:[%s268 + $0x28] sm:$0xff]
        %v317 = vld [vmem:[%s268 + $0x30] sm:$0xff]
        %v318 = vld [vmem:[%s268 + $0x38] sm:$0xff]
        %v319 = vld [vmem:[%s268 + $0x40] sm:$0xff]
        %v320 = vld [vmem:[%s268 + $0x48] sm:$0xff]
        %v321 = vld [vmem:[%s268 + $0x50] sm:$0xff]
        %v322 = vld [vmem:[%s268 + $0x58] sm:$0xff]
        %v323 = vld [vmem:[%s268 + $0x60] sm:$0xff]
        %v324 = vld [vmem:[%s268 + $0x68] sm:$0xff]
        %v325 = vld [vmem:[%s268 + $0x70] sm:$0xff]
        %v326 = vld [vmem:[%s268 + $0x78] sm:$0xff]
        %v327 = vadd.f32 %v311, %v312
        %v328 = vadd.f32 %v327, %v313
        %v329 = vadd.f32 %v328, %v314
        %v330 = vrot.slane %v329, 4
        %v331 = vadd.f32 %v329, %v330
        %v332 = vrot.slane %v331, 2
        %v333 = vadd.f32 %v331, %v332
        %v334 = vrot.slane %v333, 1
        %v335 = vadd.f32 %v333, %v334
        %v336 = vadd.f32 %v315, %v316
        %v337 = vadd.f32 %v336, %v317
        %v338 = vadd.f32 %v337, %v318
        %v339 = vrot.slane %v338, 4
        %v340 = vadd.f32 %v338, %v339
        %v341 = vrot.slane %v340, 2
        %v342 = vadd.f32 %v340, %v341
        %v343 = vrot.slane %v342, 1
        %v344 = vadd.f32 %v342, %v343
        %v345 = vadd.f32 %v319, %v320
        %v346 = vadd.f32 %v345, %v321
        %v347 = vadd.f32 %v346, %v322
        %v348 = vrot.slane %v347, 4
        %v349 = vadd.f32 %v347, %v348
        %v350 = vrot.slane %v349, 2
        %v351 = vadd.f32 %v349, %v350
        %v352 = vrot.slane %v351, 1
        %v353 = vadd.f32 %v351, %v352
        %v354 = vadd.f32 %v323, %v324
        %v355 = vadd.f32 %v354, %v325
        %v356 = vadd.f32 %v355, %v326
        %v357 = vrot.slane %v356, 4
        %v358 = vadd.f32 %v356, %v357
        %v359 = vrot.slane %v358, 2
        %v360 = vadd.f32 %v358, %v359
        %v361 = vrot.slane %v360, 1
        %v362 = vadd.f32 %v360, %v361
        %v363 = vrcp.pop 32.0
        %v364 = vmul.f32 32.0, %v363
        %v365 = vsub.f32 1.0, %v364
        %v366 = vmul.f32 %v363, %v365
        %v367 = vadd.f32 %v363, %v366
        %vm368 = vweird.f32 %v363
        %v369 = vsel %vm368, %v363, %v367
        %v370 = vmul.f32 %v335, %v369
        %v371 = vmul.f32 %v344, %v369
        %v372 = vmul.f32 %v353, %v369
        %v373 = vmul.f32 %v362, %v369
        %v374 = vsub.f32 %v311, %v370
        %v375 = vsub.f32 %v312, %v370
        %v376 = vsub.f32 %v313, %v370
        %v377 = vsub.f32 %v314, %v370
        %v378 = vsub.f32 %v315, %v371
        %v379 = vsub.f32 %v316, %v371
        %v380 = vsub.f32 %v317, %v371
        %v381 = vsub.f32 %v318, %v371
        %v382 = vsub.f32 %v319, %v372
        %v383 = vsub.f32 %v320, %v372
        %v384 = vsub.f32 %v321, %v372
        %v385 = vsub.f32 %v322, %v372
        %v386 = vsub.f32 %v323, %v373
        %v387 = vsub.f32 %v324, %v373
        %v388 = vsub.f32 %v325, %v373
        %v389 = vsub.f32 %v326, %v373
        %v390 = vmul.f32 %v374, %v374
        %v391 = vmul.f32 %v375, %v375
        %v392 = vmul.f32 %v376, %v376
        %v393 = vmul.f32 %v377, %v377
        %v394 = vmul.f32 %v378, %v378
        %v395 = vmul.f32 %v379, %v379
        %v396 = vmul.f32 %v380, %v380
        %v397 = vmul.f32 %v381, %v381
        %v398 = vmul.f32 %v382, %v382
        %v399 = vmul.f32 %v383, %v383
        %v400 = vmul.f32 %v384, %v384
        %v401 = vmul.f32 %v385, %v385
        %v402 = vmul.f32 %v386, %v386
        %v403 = vmul.f32 %v387, %v387
        %v404 = vmul.f32 %v388, %v388
        %v405 = vmul.f32 %v389, %v389
        %v406 = vadd.f32 %v390, %v391
        %v407 = vadd.f32 %v406, %v392
        %v408 = vadd.f32 %v407, %v393
        %v409 = vrot.slane %v408, 4
        %v410 = vadd.f32 %v408, %v409
        %v411 = vrot.slane %v410, 2
        %v412 = vadd.f32 %v410, %v411
        %v413 = vrot.slane %v412, 1
        %v414 = vadd.f32 %v412, %v413
        %v415 = vadd.f32 %v394, %v395
        %v416 = vadd.f32 %v415, %v396
        %v417 = vadd.f32 %v416, %v397
        %v418 = vrot.slane %v417, 4
        %v419 = vadd.f32 %v417, %v418
        %v420 = vrot.slane %v419, 2
        %v421 = vadd.f32 %v419, %v420
        %v422 = vrot.slane %v421, 1
        %v423 = vadd.f32 %v421, %v422
        %v424 = vadd.f32 %v398, %v399
        %v425 = vadd.f32 %v424, %v400
        %v426 = vadd.f32 %v425, %v401
        %v427 = vrot.slane %v426, 4
        %v428 = vadd.f32 %v426, %v427
        %v429 = vrot.slane %v428, 2
        %v430 = vadd.f32 %v428, %v429
        %v431 = vrot.slane %v430, 1
        %v432 = vadd.f32 %v430, %v431
        %v433 = vadd.f32 %v402, %v403
        %v434 = vadd.f32 %v433, %v404
        %v435 = vadd.f32 %v434, %v405
        %v436 = vrot.slane %v435, 4
        %v437 = vadd.f32 %v435, %v436
        %v438 = vrot.slane %v437, 2
        %v439 = vadd.f32 %v437, %v438
        %v440 = vrot.slane %v439, 1
        %v441 = vadd.f32 %v439, %v440
        %v442 = vmul.f32 %v414, %v369
        %v443 = vmul.f32 %v423, %v369
        %v444 = vmul.f32 %v432, %v369
        %v445 = vmul.f32 %v441, %v369
        %v446 = vadd.f32 %v442, 1e-05
        %v447 = vadd.f32 %v443, 1e-05
        %v448 = vadd.f32 %v444, 1e-05
        %v449 = vadd.f32 %v445, 1e-05
        %v450 = vrsqrt.pop %v446
        %v451 = vmul.f32 %v450, %v446
        %v452 = vmul.f32 %v451, %v450
        %v453 = vmul.f32 0.5, %v452
        %v454 = vsub.f32 1.5, %v453
        %v455 = vmul.f32 %v450, %v454
        %vm456 = vweird.f32 %v446
        %vm457 = vweird.f32 %v450
        %vm458 = vmor %vm456, %vm457
        %v459 = vsel %vm458, %v450, %v455
        %v460 = vrsqrt.pop %v447
        %v461 = vmul.f32 %v460, %v447
        %v462 = vmul.f32 %v461, %v460
        %v463 = vmul.f32 0.5, %v462
        %v464 = vsub.f32 1.5, %v463
        %v465 = vmul.f32 %v460, %v464
        %vm466 = vweird.f32 %v447
        %vm467 = vweird.f32 %v460
        %vm468 = vmor %vm466, %vm467
        %v469 = vsel %vm468, %v460, %v465
        %v470 = vrsqrt.pop %v448
        %v471 = vmul.f32 %v470, %v448
        %v472 = vmul.f32 %v471, %v470
        %v473 = vmul.f32 0.5, %v472
        %v474 = vsub.f32 1.5, %v473
        %v475 = vmul.f32 %v470, %v474
        %vm476 = vweird.f32 %v448
        %vm477 = vweird.f32 %v470
        %vm478 = vmor %vm476, %vm477
        %v479 = vsel %vm478, %v470, %v475
        %v480 = vrsqrt.pop %v449
        %v481 = vmul.f32 %v480, %v449
        %v482 = vmul.f32 %v481, %v480
        %v483 = vmul.f32 0.5, %v482
        %v484 = vsub.f32 1.5, %v483
        %v485 = vmul.f32 %v480, %v484
        %vm486 = vweird.f32 %v449
        %vm487 = vweird.f32 %v480
        %vm488 = vmor %vm486, %vm487
        %v489 = vsel %vm488, %v480, %v485
        %v490 = vmul.f32 %v374, %v459
        %v491 = vmul.f32 %v375, %v459
        %v492 = vmul.f32 %v376, %v459
        %v493 = vmul.f32 %v377, %v459
        %v494 = vmul.f32 %v378, %v469
        %v495 = vmul.f32 %v379, %v469
        %v496 = vmul.f32 %v380, %v469
        %v497 = vmul.f32 %v381, %v469
        %v498 = vmul.f32 %v382, %v479
        %v499 = vmul.f32 %v383, %v479
        %v500 = vmul.f32 %v384, %v479
        %v501 = vmul.f32 %v385, %v479
        %v502 = vmul.f32 %v386, %v489
        %v503 = vmul.f32 %v387, %v489
        %v504 = vmul.f32 %v388, %v489
        %v505 = vmul.f32 %v389, %v489
        %507 = vset.pattern.permute.xlu0 0
        %508 = vperm.xlu0 %507, %v303
        %v509 = vpop.permute.xlu0 %508
        %512 = vset.pattern.permute.xlu0 0
        %513 = vperm.xlu0 %512, %v304
        %v514 = vpop.permute.xlu0 %513
        %517 = vset.pattern.permute.xlu0 0
        %518 = vperm.xlu0 %517, %v305
        %v519 = vpop.permute.xlu0 %518
        %522 = vset.pattern.permute.xlu0 0
        %523 = vperm.xlu0 %522, %v306
        %v524 = vpop.permute.xlu0 %523
        %v526 = vmul.f32 %v490, %v509
        %v527 = vmul.f32 %v491, %v514
        %v528 = vmul.f32 %v492, %v519
        %v529 = vmul.f32 %v493, %v524
        %v530 = vmul.f32 %v494, %v509
        %v531 = vmul.f32 %v495, %v514
        %v532 = vmul.f32 %v496, %v519
        %v533 = vmul.f32 %v497, %v524
        %v534 = vmul.f32 %v498, %v509
        %v535 = vmul.f32 %v499, %v514
        %v536 = vmul.f32 %v500, %v519
        %v537 = vmul.f32 %v501, %v524
        %v538 = vmul.f32 %v502, %v509
        %v539 = vmul.f32 %v503, %v514
        %v540 = vmul.f32 %v504, %v519
        %v541 = vmul.f32 %v505, %v524
        %543 = vset.pattern.permute.xlu0 0
        %544 = vperm.xlu0 %543, %v307
        %v545 = vpop.permute.xlu0 %544
        %548 = vset.pattern.permute.xlu0 0
        %549 = vperm.xlu0 %548, %v308
        %v550 = vpop.permute.xlu0 %549
        %553 = vset.pattern.permute.xlu0 0
        %554 = vperm.xlu0 %553, %v309
        %v555 = vpop.permute.xlu0 %554
        %558 = vset.pattern.permute.xlu0 0
        %559 = vperm.xlu0 %558, %v310
        %v560 = vpop.permute.xlu0 %559
        %v562 = vadd.f32 %v526, %v545
        %v563 = vadd.f32 %v527, %v550
        %v564 = vadd.f32 %v528, %v555
        %v565 = vadd.f32 %v529, %v560
        %v566 = vadd.f32 %v530, %v545
        %v567 = vadd.f32 %v531, %v550
        %v568 = vadd.f32 %v532, %v555
        %v569 = vadd.f32 %v533, %v560
        %v570 = vadd.f32 %v534, %v545
        %v571 = vadd.f32 %v535, %v550
        %v572 = vadd.f32 %v536, %v555
        %v573 = vadd.f32 %v537, %v560
        %v574 = vadd.f32 %v538, %v545
        %v575 = vadd.f32 %v539, %v550
        %v576 = vadd.f32 %v540, %v555
        %v577 = vadd.f32 %v541, %v560
        %v578 = vpack.c.bf16 %v562, %v562
        %v579 = vpack.c.bf16 %v563, %v563
        %v580 = vpack.c.bf16 %v564, %v564
        %v581 = vpack.c.bf16 %v565, %v565
        %582 = vst [vmem:[#allocation2] sm:$0xf] %v578
        %583 = vst [vmem:[#allocation2 + $0x10] sm:$0xf] %v579
        %584 = vst [vmem:[#allocation2 + $0x20] sm:$0xf] %v580
        %585 = vst [vmem:[#allocation2 + $0x30] sm:$0xf] %v581
        %v586 = vpack.c.bf16 %v566, %v566
        %v587 = vpack.c.bf16 %v567, %v567
        %v588 = vpack.c.bf16 %v568, %v568
        %v589 = vpack.c.bf16 %v569, %v569
        %590 = vst [vmem:[#allocation2 + $0x4] sm:$0xf] %v586
        %591 = vst [vmem:[#allocation2 + $0x14] sm:$0xf] %v587
        %592 = vst [vmem:[#allocation2 + $0x24] sm:$0xf] %v588
        %593 = vst [vmem:[#allocation2 + $0x34] sm:$0xf] %v589
        %v594 = vpack.c.bf16 %v570, %v570
        %v595 = vpack.c.bf16 %v571, %v571
        %v596 = vpack.c.bf16 %v572, %v572
        %v597 = vpack.c.bf16 %v573, %v573
        %598 = vst [vmem:[#allocation2 + $0x8] sm:$0xf] %v594
        %599 = vst [vmem:[#allocation2 + $0x18] sm:$0xf] %v595
        %600 = vst [vmem:[#allocation2 + $0x28] sm:$0xf] %v596
        %601 = vst [vmem:[#allocation2 + $0x38] sm:$0xf] %v597
        %v602 = vpack.c.bf16 %v574, %v574
        %v603 = vpack.c.bf16 %v575, %v575
        %v604 = vpack.c.bf16 %v576, %v576
        %v605 = vpack.c.bf16 %v577, %v577
        %606 = vst [vmem:[#allocation2 + $0xc] sm:$0xf] %v602
        %607 = vst [vmem:[#allocation2 + $0x1c] sm:$0xf] %v603
        %608 = vst [vmem:[#allocation2 + $0x2c] sm:$0xf] %v604
        %609 = vst [vmem:[#allocation2 + $0x3c] sm:$0xf] %v605
        %v610 = vld [vmem:[%s3] sm:$0xf]
        %v611 = vld [vmem:[%s3 + $0x4] sm:$0xf]
        %v612 = vld [vmem:[%s3 + $0x8] sm:$0xf]
        %v613 = vld [vmem:[%s3 + $0xc] sm:$0xf]
        %v614 = vld [vmem:[%s3 + $0x10] sm:$0xf]
        %v615 = vld [vmem:[%s3 + $0x14] sm:$0xf]
        %v616 = vld [vmem:[%s3 + $0x18] sm:$0xf]
        %v617 = vld [vmem:[%s3 + $0x1c] sm:$0xf]
        %v618 = vld [vmem:[%s3 + $0x20] sm:$0xf]
        %v619 = vld [vmem:[%s3 + $0x24] sm:$0xf]
        %v620 = vld [vmem:[%s3 + $0x28] sm:$0xf]
        %v621 = vld [vmem:[%s3 + $0x2c] sm:$0xf]
        %v622 = vld [vmem:[#allocation2] sm:$0xff]
        %v623 = vld [vmem:[#allocation2 + $0x8] sm:$0xff]
        %v624 = vld [vmem:[#allocation2 + $0x10] sm:$0xff]
        %v625 = vld [vmem:[#allocation2 + $0x18] sm:$0xff]
        %v626 = vld [vmem:[#allocation2 + $0x20] sm:$0xff]
        %v627 = vld [vmem:[#allocation2 + $0x28] sm:$0xff]
        %v628 = vld [vmem:[#allocation2 + $0x30] sm:$0xff]
        %v629 = vld [vmem:[#allocation2 + $0x38] sm:$0xff]
        %v630 = vld [vmem:[%s4] sm:$0xff]
        %v631 = vld [vmem:[%s4 + $0x8] sm:$0xff]
        %v632 = vld [vmem:[%s4 + $0x10] sm:$0xff]
        %v633 = vld [vmem:[%s4 + $0x18] sm:$0xff]
        %v634 = vld [vmem:[%s4 + $0x20] sm:$0xff]
        %v635 = vld [vmem:[%s4 + $0x28] sm:$0xff]
        %v636 = vld [vmem:[%s4 + $0x30] sm:$0xff]
        %v637 = vld [vmem:[%s4 + $0x38] sm:$0xff]
        %v638 = vld [vmem:[%s4 + $0x40] sm:$0xff]
        %v639 = vld [vmem:[%s4 + $0x48] sm:$0xff]
        %v640 = vld [vmem:[%s4 + $0x50] sm:$0xff]
        %v641 = vld [vmem:[%s4 + $0x58] sm:$0xff]
        %643 = vset.pattern.permute.xlu0 0
        %644 = vperm.xlu0 %643, %v630
        %v645 = vpop.permute.xlu0 %644
        %648 = vset.pattern.permute.xlu0 0
        %649 = vperm.xlu0 %648, %v631
        %v650 = vpop.permute.xlu0 %649
        %653 = vset.pattern.permute.xlu0 0
        %654 = vperm.xlu0 %653, %v632
        %v655 = vpop.permute.xlu0 %654
        %658 = vset.pattern.permute.xlu0 0
        %659 = vperm.xlu0 %658, %v633
        %v660 = vpop.permute.xlu0 %659
        %663 = vset.pattern.permute.xlu0 0
        %664 = vperm.xlu0 %663, %v634
        %v665 = vpop.permute.xlu0 %664
        %668 = vset.pattern.permute.xlu0 0
        %669 = vperm.xlu0 %668, %v635
        %v670 = vpop.permute.xlu0 %669
        %673 = vset.pattern.permute.xlu0 0
        %674 = vperm.xlu0 %673, %v636
        %v675 = vpop.permute.xlu0 %674
        %678 = vset.pattern.permute.xlu0 0
        %679 = vperm.xlu0 %678, %v637
        %v680 = vpop.permute.xlu0 %679
        %683 = vset.pattern.permute.xlu0 0
        %684 = vperm.xlu0 %683, %v638
        %v685 = vpop.permute.xlu0 %684
        %688 = vset.pattern.permute.xlu0 0
        %689 = vperm.xlu0 %688, %v639
        %v690 = vpop.permute.xlu0 %689
        %693 = vset.pattern.permute.xlu0 0
        %694 = vperm.xlu0 %693, %v640
        %v695 = vpop.permute.xlu0 %694
        %698 = vset.pattern.permute.xlu0 0
        %699 = vperm.xlu0 %698, %v641
        %v700 = vpop.permute.xlu0 %699
        %v714 = vunpack.c.l.b16 %v610
        %v715 = vunpack.c.l.b16 %v611
        %v716 = vunpack.c.l.b16 %v612
        %v717 = vunpack.c.l.b16 %v613
        %v718 = vunpack.c.l.b16 %v614
        %v719 = vunpack.c.l.b16 %v615
        %v720 = vunpack.c.l.b16 %v616
        %v721 = vunpack.c.l.b16 %v617
        %v722 = vunpack.c.l.b16 %v618
        %v723 = vunpack.c.l.b16 %v619
        %v724 = vunpack.c.l.b16 %v620
        %v725 = vunpack.c.l.b16 %v621
        %v726 = vpack.c.b16 %v715, %v714
        %v727 = vpack.c.b16 %v717, %v716
        %v728 = vpack.c.b16 %v719, %v718
        %v729 = vpack.c.b16 %v721, %v720
        %v730 = vpack.c.b16 %v723, %v722
        %v731 = vpack.c.b16 %v725, %v724
        %v740 = vunpack.c.l.b16 %v622
        %v741 = vunpack.c.h.b16 %v622
        %v742 = vunpack.c.l.b16 %v623
        %v743 = vunpack.c.h.b16 %v623
        %v744 = vunpack.c.l.b16 %v624
        %v745 = vunpack.c.h.b16 %v624
        %v746 = vunpack.c.l.b16 %v625
        %v747 = vunpack.c.h.b16 %v625
        %v748 = vunpack.c.l.b16 %v626
        %v749 = vunpack.c.h.b16 %v626
        %v750 = vunpack.c.l.b16 %v627
        %v751 = vunpack.c.h.b16 %v627
        %v752 = vunpack.c.l.b16 %v628
        %v753 = vunpack.c.h.b16 %v628
        %v754 = vunpack.c.l.b16 %v629
        %v755 = vunpack.c.h.b16 %v629
        %v756 = vpack.c.b16 %v744, %v740
        %v757 = vpack.c.b16 %v745, %v741
        %v758 = vpack.c.b16 %v746, %v742
        %v759 = vpack.c.b16 %v747, %v743
        %v760 = vpack.c.b16 %v752, %v748
        %v761 = vpack.c.b16 %v753, %v749
        %v762 = vpack.c.b16 %v754, %v750
        %v763 = vpack.c.b16 %v755, %v751
        %vm772 = vcmask 261120
        %v774 = vsel %vm772, %v726, 0
        %v777 = vsel %vm772, %v727, 0
        %v780 = vsel %vm772, %v728, 0
        %v783 = vsel %vm772, %v729, 0
        %v786 = vsel %vm772, %v730, 0
        %v789 = vsel %vm772, %v731, 0
        %791 = vmatpush.bf16.msra.mxu0 0
        %792 = vmatpush.bf16.msra.mxu0 0
        %793 = vmatpush.bf16.msra.mxu0 0
        %794 = vmatpush.bf16.msra.mxu0 0
        %795 = vmatpush.bf16.msra.mxu0 0
        %796 = vmatpush.bf16.msra.mxu0 0
        %797 = vmatpush.bf16.msra.mxu0 %v760
        %798 = vmatpush.bf16.msra.mxu0 %v756
        %799 = vmatmul.bf16.gmra.mxu0 %v774
        %v800 = vpop.f32.mrf.mxu0
        %v801 = vadd.f32 %v645, %v800
        %v802 = vpop.f32.mrf.mxu0
        %v803 = vadd.f32 %v650, %v802
        %804 = vmatmul.bf16.gmra.mxu0 %v777
        %v805 = vpop.f32.mrf.mxu0
        %v806 = vadd.f32 %v655, %v805
        %v807 = vpop.f32.mrf.mxu0
        %v808 = vadd.f32 %v660, %v807
        %809 = vmatmul.bf16.gmra.mxu0 %v780
        %v810 = vpop.f32.mrf.mxu0
        %v811 = vadd.f32 %v665, %v810
        %v812 = vpop.f32.mrf.mxu0
        %v813 = vadd.f32 %v670, %v812
        %814 = vmatmul.bf16.gmra.mxu0 %v783
        %v815 = vpop.f32.mrf.mxu0
        %v816 = vadd.f32 %v675, %v815
        %v817 = vpop.f32.mrf.mxu0
        %v818 = vadd.f32 %v680, %v817
        %819 = vmatmul.bf16.gmra.mxu0 %v786
        %v820 = vpop.f32.mrf.mxu0
        %v821 = vadd.f32 %v685, %v820
        %v822 = vpop.f32.mrf.mxu0
        %v823 = vadd.f32 %v690, %v822
        %824 = vmatmul.bf16.gmra.mxu0 %v789
        %v825 = vpop.f32.mrf.mxu0
        %v826 = vadd.f32 %v695, %v825
        %v827 = vpop.f32.mrf.mxu0
        %v828 = vadd.f32 %v700, %v827
        %829 = vdwg.mxu0
        %830 = vmatpush.bf16.msra.mxu0 0
        %831 = vmatpush.bf16.msra.mxu0 0
        %832 = vmatpush.bf16.msra.mxu0 0
        %833 = vmatpush.bf16.msra.mxu0 0
        %834 = vmatpush.bf16.msra.mxu0 0
        %835 = vmatpush.bf16.msra.mxu0 0
        %836 = vmatpush.bf16.msra.mxu0 %v761
        %837 = vmatpush.bf16.msra.mxu0 %v757
        %838 = vmatmul.bf16.gmra.mxu0 %v774
        %v839 = vpop.f32.mrf.mxu0
        %v840 = vadd.f32 %v645, %v839
        %v841 = vpop.f32.mrf.mxu0
        %v842 = vadd.f32 %v650, %v841
        %843 = vmatmul.bf16.gmra.mxu0 %v777
        %v844 = vpop.f32.mrf.mxu0
        %v845 = vadd.f32 %v655, %v844
        %v846 = vpop.f32.mrf.mxu0
        %v847 = vadd.f32 %v660, %v846
        %848 = vmatmul.bf16.gmra.mxu0 %v780
        %v849 = vpop.f32.mrf.mxu0
        %v850 = vadd.f32 %v665, %v849
        %v851 = vpop.f32.mrf.mxu0
        %v852 = vadd.f32 %v670, %v851
        %853 = vmatmul.bf16.gmra.mxu0 %v783
        %v854 = vpop.f32.mrf.mxu0
        %v855 = vadd.f32 %v675, %v854
        %v856 = vpop.f32.mrf.mxu0
        %v857 = vadd.f32 %v680, %v856
        %858 = vmatmul.bf16.gmra.mxu0 %v786
        %v859 = vpop.f32.mrf.mxu0
        %v860 = vadd.f32 %v685, %v859
        %v861 = vpop.f32.mrf.mxu0
        %v862 = vadd.f32 %v690, %v861
        %863 = vmatmul.bf16.gmra.mxu0 %v789
        %v864 = vpop.f32.mrf.mxu0
        %v865 = vadd.f32 %v695, %v864
        %v866 = vpop.f32.mrf.mxu0
        %v867 = vadd.f32 %v700, %v866
        %868 = vdwg.mxu0
        %869 = vmatpush.bf16.msra.mxu0 0
        %870 = vmatpush.bf16.msra.mxu0 0
        %871 = vmatpush.bf16.msra.mxu0 0
        %872 = vmatpush.bf16.msra.mxu0 0
        %873 = vmatpush.bf16.msra.mxu0 0
        %874 = vmatpush.bf16.msra.mxu0 0
        %875 = vmatpush.bf16.msra.mxu0 %v762
        %876 = vmatpush.bf16.msra.mxu0 %v758
        %877 = vmatmul.bf16.gmra.mxu0 %v774
        %v878 = vpop.f32.mrf.mxu0
        %v879 = vadd.f32 %v645, %v878
        %v880 = vpop.f32.mrf.mxu0
        %v881 = vadd.f32 %v650, %v880
        %882 = vmatmul.bf16.gmra.mxu0 %v777
        %v883 = vpop.f32.mrf.mxu0
        %v884 = vadd.f32 %v655, %v883
        %v885 = vpop.f32.mrf.mxu0
        %v886 = vadd.f32 %v660, %v885
        %887 = vmatmul.bf16.gmra.mxu0 %v780
        %v888 = vpop.f32.mrf.mxu0
        %v889 = vadd.f32 %v665, %v888
        %v890 = vpop.f32.mrf.mxu0
        %v891 = vadd.f32 %v670, %v890
        %892 = vmatmul.bf16.gmra.mxu0 %v783
        %v893 = vpop.f32.mrf.mxu0
        %v894 = vadd.f32 %v675, %v893
        %v895 = vpop.f32.mrf.mxu0
        %v896 = vadd.f32 %v680, %v895
        %897 = vmatmul.bf16.gmra.mxu0 %v786
        %v898 = vpop.f32.mrf.mxu0
        %v899 = vadd.f32 %v685, %v898
        %v900 = vpop.f32.mrf.mxu0
        %v901 = vadd.f32 %v690, %v900
        %902 = vmatmul.bf16.gmra.mxu0 %v789
        %v903 = vpop.f32.mrf.mxu0
        %v904 = vadd.f32 %v695, %v903
        %v905 = vpop.f32.mrf.mxu0
        %v906 = vadd.f32 %v700, %v905
        %907 = vdwg.mxu0
        %908 = vmatpush.bf16.msra.mxu0 0
        %909 = vmatpush.bf16.msra.mxu0 0
        %910 = vmatpush.bf16.msra.mxu0 0
        %911 = vmatpush.bf16.msra.mxu0 0
        %912 = vmatpush.bf16.msra.mxu0 0
        %913 = vmatpush.bf16.msra.mxu0 0
        %914 = vmatpush.bf16.msra.mxu0 %v763
        %915 = vmatpush.bf16.msra.mxu0 %v759
        %916 = vmatmul.bf16.gmra.mxu0 %v774
        %v917 = vpop.f32.mrf.mxu0
        %v918 = vadd.f32 %v645, %v917
        %v919 = vpop.f32.mrf.mxu0
        %v920 = vadd.f32 %v650, %v919
        %921 = vmatmul.bf16.gmra.mxu0 %v777
        %v922 = vpop.f32.mrf.mxu0
        %v923 = vadd.f32 %v655, %v922
        %v924 = vpop.f32.mrf.mxu0
        %v925 = vadd.f32 %v660, %v924
        %926 = vmatmul.bf16.gmra.mxu0 %v780
        %v927 = vpop.f32.mrf.mxu0
        %v928 = vadd.f32 %v665, %v927
        %v929 = vpop.f32.mrf.mxu0
        %v930 = vadd.f32 %v670, %v929
        %931 = vmatmul.bf16.gmra.mxu0 %v783
        %v932 = vpop.f32.mrf.mxu0
        %v933 = vadd.f32 %v675, %v932
        %v934 = vpop.f32.mrf.mxu0
        %v935 = vadd.f32 %v680, %v934
        %936 = vmatmul.bf16.gmra.mxu0 %v786
        %v937 = vpop.f32.mrf.mxu0
        %v938 = vadd.f32 %v685, %v937
        %v939 = vpop.f32.mrf.mxu0
        %v940 = vadd.f32 %v690, %v939
        %941 = vmatmul.bf16.gmra.mxu0 %v789
        %v942 = vpop.f32.mrf.mxu0
        %v943 = vadd.f32 %v695, %v942
        %v944 = vpop.f32.mrf.mxu0
        %v945 = vadd.f32 %v700, %v944
        %946 = vdwg.mxu0
        %v947 = vmul.f32 %v801, 0.35355338
        %v948 = vmul.f32 %v840, 0.35355338
        %v949 = vmul.f32 %v879, 0.35355338
        %v950 = vmul.f32 %v918, 0.35355338
        %v951 = vmul.f32 %v803, 0.35355338
        %v952 = vmul.f32 %v842, 0.35355338
        %v953 = vmul.f32 %v881, 0.35355338
        %v954 = vmul.f32 %v920, 0.35355338
        %v955 = vmul.f32 %v806, 0.35355338
        %v956 = vmul.f32 %v845, 0.35355338
        %v957 = vmul.f32 %v884, 0.35355338
        %v958 = vmul.f32 %v923, 0.35355338
        %v959 = vmul.f32 %v808, 0.35355338
        %v960 = vmul.f32 %v847, 0.35355338
        %v961 = vmul.f32 %v886, 0.35355338
        %v962 = vmul.f32 %v925, 0.35355338
        %v963 = vpack.c.bf16 %v948, %v947
        %v964 = vpack.c.bf16 %v950, %v949
        %v965 = vpack.c.bf16 %v952, %v951
        %v966 = vpack.c.bf16 %v954, %v953
        %v967 = vpack.c.bf16 %v956, %v955
        %v968 = vpack.c.bf16 %v958, %v957
        %v969 = vpack.c.bf16 %v960, %v959
        %v970 = vpack.c.bf16 %v962, %v961
        %971 = vst [vmem:[#allocation3] sm:$0xff] %v963
        %972 = vst [vmem:[#allocation3 + $0x8] sm:$0xff] %v964
        %973 = vst [vmem:[#allocation3 + $0x10] sm:$0xff] %v965
        %974 = vst [vmem:[#allocation3 + $0x18] sm:$0xff] %v966
        %975 = vst [vmem:[#allocation3 + $0x20] sm:$0xff] %v967
        %976 = vst [vmem:[#allocation3 + $0x28] sm:$0xff] %v968
        %977 = vst [vmem:[#allocation3 + $0x30] sm:$0xff] %v969
        %978 = vst [vmem:[#allocation3 + $0x38] sm:$0xff] %v970
        %v979 = vpack.c.bf16 %v850, %v811
        %v980 = vpack.c.bf16 %v928, %v889
        %v981 = vpack.c.bf16 %v852, %v813
        %v982 = vpack.c.bf16 %v930, %v891
        %v983 = vpack.c.bf16 %v855, %v816
        %v984 = vpack.c.bf16 %v933, %v894
        %v985 = vpack.c.bf16 %v857, %v818
        %v986 = vpack.c.bf16 %v935, %v896
        %987 = vst [vmem:[#allocation4] sm:$0xff] %v979
        %988 = vst [vmem:[#allocation4 + $0x8] sm:$0xff] %v980
        %989 = vst [vmem:[#allocation4 + $0x10] sm:$0xff] %v981
        %990 = vst [vmem:[#allocation4 + $0x18] sm:$0xff] %v982
        %991 = vst [vmem:[#allocation4 + $0x20] sm:$0xff] %v983
        %992 = vst [vmem:[#allocation4 + $0x28] sm:$0xff] %v984
        %993 = vst [vmem:[#allocation4 + $0x30] sm:$0xff] %v985
        %994 = vst [vmem:[#allocation4 + $0x38] sm:$0xff] %v986
        %v995 = vpack.c.bf16 %v860, %v821
        %v996 = vpack.c.bf16 %v938, %v899
        %v997 = vpack.c.bf16 %v862, %v823
        %v998 = vpack.c.bf16 %v940, %v901
        %v999 = vpack.c.bf16 %v865, %v826
        %v1000 = vpack.c.bf16 %v943, %v904
        %v1001 = vpack.c.bf16 %v867, %v828
        %v1002 = vpack.c.bf16 %v945, %v906
        %1003 = vst [vmem:[#allocation5] sm:$0xff] %v995
        %1004 = vst [vmem:[#allocation5 + $0x8] sm:$0xff] %v996
        %1005 = vst [vmem:[#allocation5 + $0x10] sm:$0xff] %v997
        %1006 = vst [vmem:[#allocation5 + $0x18] sm:$0xff] %v998
        %1007 = vst [vmem:[#allocation5 + $0x20] sm:$0xff] %v999
        %1008 = vst [vmem:[#allocation5 + $0x28] sm:$0xff] %v1000
        %1009 = vst [vmem:[#allocation5 + $0x30] sm:$0xff] %v1001
        %1010 = vst [vmem:[#allocation5 + $0x38] sm:$0xff] %v1002
        loop: start=0, step=1, limit=4
        $region53: #{tpu_custom_call.1} parent=47 // loop_pre_header
          _
        $region54: #{tpu_custom_call.1} parent=47 // loop_header
          %s1012 = sphi 0, %s1016
          %p1013 = scmp.ge.s32.totalorder %s1012, 4
        $region55: #{tpu_custom_call.1} parent=47 // loop_header_branch
          %1015 = sbr.rel (%p1013) target = $region59
        $region56: #{tpu_custom_call.1} parent=47 // loop_body
          %s1017 = smul.u32 %s1012, 128
          %s1018 = sshra.s32 %s1017, 7
          %s1019 = sand.u32 %s1017, 127
          %s1020 = smul.addr %s1018, 4
          %s1021 = scalar_lea.vmem [#allocation3], %s1020
          %v1022 = vld [vmem:[%s1021] sm:$0xf]
          %v1023 = vld [vmem:[%s1021 + $0x10] sm:$0xf]
          %v1024 = vld [vmem:[%s1021 + $0x20] sm:$0xf]
          %v1025 = vld [vmem:[%s1021 + $0x30] sm:$0xf]
          %s1026 = smul.addr %s1018, 4
          %s1027 = scalar_lea.vmem [#allocation4], %s1026
          %v1028 = vld [vmem:[%s1027] sm:$0xf]
          %v1029 = vld [vmem:[%s1027 + $0x10] sm:$0xf]
          %v1030 = vld [vmem:[%s1027 + $0x20] sm:$0xf]
          %v1031 = vld [vmem:[%s1027 + $0x30] sm:$0xf]
          %s1032 = smul.addr %s1018, 4
          %s1033 = scalar_lea.vmem [#allocation5], %s1032
          %v1034 = vld [vmem:[%s1033] sm:$0xf]
          %v1035 = vld [vmem:[%s1033 + $0x10] sm:$0xf]
          %v1036 = vld [vmem:[%s1033 + $0x20] sm:$0xf]
          %v1037 = vld [vmem:[%s1033 + $0x30] sm:$0xf]
          %1038 = vxpose.xlu0.c.b16.start [1/8] %v1022, 128
          %1039 = vxpose.xlu0.c.b16.cont [2/8] 0, 128
          %1040 = vxpose.xlu0.c.b16.cont [3/8] 0, 128
          %1041 = vxpose.xlu0.c.b16.cont [4/8] 0, 128
          %1042 = vxpose.xlu0.c.b16.cont [5/8] 0, 128
          %1043 = vxpose.xlu0.c.b16.cont [6/8] 0, 128
          %1044 = vxpose.xlu0.c.b16.cont [7/8] 0, 128
          %1045 = vxpose.xlu0.c.b16.end [8/8] 0, 128
          %v1046 = vpop.trf.xlu0
          %v1047 = vpop.trf.xlu0
          %v1048 = vpop.trf.xlu0
          %v1049 = vpop.trf.xlu0
          %v1050 = vpop.trf.xlu0
          %v1051 = vpop.trf.xlu0
          %v1052 = vpop.trf.xlu0
          %v1053 = vpop.trf.xlu0
          %vm1054 = vcmask 64512
          %v1056 = vsel %vm1054, %v1046, 0
          %v1059 = vsel %vm1054, %v1047, 0
          %v1062 = vsel %vm1054, %v1048, 0
          %v1065 = vsel %vm1054, %v1049, 0
          %v1068 = vsel %vm1054, %v1050, 0
          %v1071 = vsel %vm1054, %v1051, 0
          %v1074 = vsel %vm1054, %v1052, 0
          %v1077 = vsel %vm1054, %v1053, 0
          %vm1079 = vcmask 1043456
          %v1081 = vsel %vm1079, %v1028, 0
          %1083 = vmatpush.bf16.msra.mxu0 0
          %1084 = vmatpush.bf16.msra.mxu0 0
          %1085 = vmatpush.bf16.msra.mxu0 0
          %1086 = vmatpush.bf16.msra.mxu0 0
          %1087 = vmatpush.bf16.msra.mxu0 0
          %1088 = vmatpush.bf16.msra.mxu0 0
          %1089 = vmatpush.bf16.msra.mxu0 0
          %1090 = vmatpush.bf16.msra.mxu0 %v1081
          %1091 = vmatmul.bf16.gmra.mxu0 %v1056
          %v1092 = vpop.f32.mrf.mxu0
          %v1093 = vadd.f32 0.0, %v1092
          %v1094 = vpop.f32.mrf.mxu0
          %v1095 = vadd.f32 0.0, %v1094
          %1096 = vmatmul.bf16.gmra.mxu0 %v1059
          %v1097 = vpop.f32.mrf.mxu0
          %v1098 = vadd.f32 0.0, %v1097
          %v1099 = vpop.f32.mrf.mxu0
          %v1100 = vadd.f32 0.0, %v1099
          %1101 = vmatmul.bf16.gmra.mxu0 %v1062
          %v1102 = vpop.f32.mrf.mxu0
          %v1103 = vadd.f32 0.0, %v1102
          %v1104 = vpop.f32.mrf.mxu0
          %v1105 = vadd.f32 0.0, %v1104
          %1106 = vmatmul.bf16.gmra.mxu0 %v1065
          %v1107 = vpop.f32.mrf.mxu0
          %v1108 = vadd.f32 0.0, %v1107
          %v1109 = vpop.f32.mrf.mxu0
          %v1110 = vadd.f32 0.0, %v1109
          %1111 = vmatmul.bf16.gmra.mxu0 %v1068
          %v1112 = vpop.f32.mrf.mxu0
          %v1113 = vadd.f32 0.0, %v1112
          %v1114 = vpop.f32.mrf.mxu0
          %v1115 = vadd.f32 0.0, %v1114
          %1116 = vmatmul.bf16.gmra.mxu0 %v1071
          %v1117 = vpop.f32.mrf.mxu0
          %v1118 = vadd.f32 0.0, %v1117
          %v1119 = vpop.f32.mrf.mxu0
          %v1120 = vadd.f32 0.0, %v1119
          %1121 = vmatmul.bf16.gmra.mxu0 %v1074
          %v1122 = vpop.f32.mrf.mxu0
          %v1123 = vadd.f32 0.0, %v1122
          %v1124 = vpop.f32.mrf.mxu0
          %v1125 = vadd.f32 0.0, %v1124
          %1126 = vmatmul.bf16.gmra.mxu0 %v1077
          %v1127 = vpop.f32.mrf.mxu0
          %v1128 = vadd.f32 0.0, %v1127
          %v1129 = vpop.f32.mrf.mxu0
          %v1130 = vadd.f32 0.0, %v1129
          %1131 = vdwg.mxu0
          %1132 = vxpose.xlu0.c.b16.start [1/8] %v1023, 128
          %1133 = vxpose.xlu0.c.b16.cont [2/8] 0, 128
          %1134 = vxpose.xlu0.c.b16.cont [3/8] 0, 128
          %1135 = vxpose.xlu0.c.b16.cont [4/8] 0, 128
          %1136 = vxpose.xlu0.c.b16.cont [5/8] 0, 128
          %1137 = vxpose.xlu0.c.b16.cont [6/8] 0, 128
          %1138 = vxpose.xlu0.c.b16.cont [7/8] 0, 128
          %1139 = vxpose.xlu0.c.b16.end [8/8] 0, 128
          %v1140 = vpop.trf.xlu0
          %v1141 = vpop.trf.xlu0
          %v1142 = vpop.trf.xlu0
          %v1143 = vpop.trf.xlu0
          %v1144 = vpop.trf.xlu0
          %v1145 = vpop.trf.xlu0
          %v1146 = vpop.trf.xlu0
          %v1147 = vpop.trf.xlu0
          %v1149 = vsel %vm1054, %v1140, 0
          %v1152 = vsel %vm1054, %v1141, 0
          %v1155 = vsel %vm1054, %v1142, 0
          %v1158 = vsel %vm1054, %v1143, 0
          %v1161 = vsel %vm1054, %v1144, 0
          %v1164 = vsel %vm1054, %v1145, 0
          %v1167 = vsel %vm1054, %v1146, 0
          %v1170 = vsel %vm1054, %v1147, 0
          %v1173 = vsel %vm1079, %v1029, 0
          %1175 = vmatpush.bf16.msra.mxu0 0
          %1176 = vmatpush.bf16.msra.mxu0 0
          %1177 = vmatpush.bf16.msra.mxu0 0
          %1178 = vmatpush.bf16.msra.mxu0 0
          %1179 = vmatpush.bf16.msra.mxu0 0
          %1180 = vmatpush.bf16.msra.mxu0 0
          %1181 = vmatpush.bf16.msra.mxu0 0
          %1182 = vmatpush.bf16.msra.mxu0 %v1173
          %1183 = vmatmul.bf16.gmra.mxu0 %v1149
          %v1184 = vpop.f32.mrf.mxu0
          %v1185 = vadd.f32 0.0, %v1184
          %v1186 = vpop.f32.mrf.mxu0
          %v1187 = vadd.f32 0.0, %v1186
          %1188 = vmatmul.bf16.gmra.mxu0 %v1152
          %v1189 = vpop.f32.mrf.mxu0
          %v1190 = vadd.f32 0.0, %v1189
          %v1191 = vpop.f32.mrf.mxu0
          %v1192 = vadd.f32 0.0, %v1191
          %1193 = vmatmul.bf16.gmra.mxu0 %v1155
          %v1194 = vpop.f32.mrf.mxu0
          %v1195 = vadd.f32 0.0, %v1194
          %v1196 = vpop.f32.mrf.mxu0
          %v1197 = vadd.f32 0.0, %v1196
          %1198 = vmatmul.bf16.gmra.mxu0 %v1158
          %v1199 = vpop.f32.mrf.mxu0
          %v1200 = vadd.f32 0.0, %v1199
          %v1201 = vpop.f32.mrf.mxu0
          %v1202 = vadd.f32 0.0, %v1201
          %1203 = vmatmul.bf16.gmra.mxu0 %v1161
          %v1204 = vpop.f32.mrf.mxu0
          %v1205 = vadd.f32 0.0, %v1204
          %v1206 = vpop.f32.mrf.mxu0
          %v1207 = vadd.f32 0.0, %v1206
          %1208 = vmatmul.bf16.gmra.mxu0 %v1164
          %v1209 = vpop.f32.mrf.mxu0
          %v1210 = vadd.f32 0.0, %v1209
          %v1211 = vpop.f32.mrf.mxu0
          %v1212 = vadd.f32 0.0, %v1211
          %1213 = vmatmul.bf16.gmra.mxu0 %v1167
          %v1214 = vpop.f32.mrf.mxu0
          %v1215 = vadd.f32 0.0, %v1214
          %v1216 = vpop.f32.mrf.mxu0
          %v1217 = vadd.f32 0.0, %v1216
          %1218 = vmatmul.bf16.gmra.mxu0 %v1170
          %v1219 = vpop.f32.mrf.mxu0
          %v1220 = vadd.f32 0.0, %v1219
          %v1221 = vpop.f32.mrf.mxu0
          %v1222 = vadd.f32 0.0, %v1221
          %1223 = vdwg.mxu0
          %1224 = vxpose.xlu0.c.b16.start [1/8] %v1024, 128
          %1225 = vxpose.xlu0.c.b16.cont [2/8] 0, 128
          %1226 = vxpose.xlu0.c.b16.cont [3/8] 0, 128
          %1227 = vxpose.xlu0.c.b16.cont [4/8] 0, 128
          %1228 = vxpose.xlu0.c.b16.cont [5/8] 0, 128
          %1229 = vxpose.xlu0.c.b16.cont [6/8] 0, 128
          %1230 = vxpose.xlu0.c.b16.cont [7/8] 0, 128
          %1231 = vxpose.xlu0.c.b16.end [8/8] 0, 128
          %v1232 = vpop.trf.xlu0
          %v1233 = vpop.trf.xlu0
          %v1234 = vpop.trf.xlu0
          %v1235 = vpop.trf.xlu0
          %v1236 = vpop.trf.xlu0
          %v1237 = vpop.trf.xlu0
          %v1238 = vpop.trf.xlu0
          %v1239 = vpop.trf.xlu0
          %v1241 = vsel %vm1054, %v1232, 0
          %v1244 = vsel %vm1054, %v1233, 0
          %v1247 = vsel %vm1054, %v1234, 0
          %v1250 = vsel %vm1054, %v1235, 0
          %v1253 = vsel %vm1054, %v1236, 0
          %v1256 = vsel %vm1054, %v1237, 0
          %v1259 = vsel %vm1054, %v1238, 0
          %v1262 = vsel %vm1054, %v1239, 0
          %v1265 = vsel %vm1079, %v1030, 0
          %1267 = vmatpush.bf16.msra.mxu0 0
          %1268 = vmatpush.bf16.msra.mxu0 0
          %1269 = vmatpush.bf16.msra.mxu0 0
          %1270 = vmatpush.bf16.msra.mxu0 0
          %1271 = vmatpush.bf16.msra.mxu0 0
          %1272 = vmatpush.bf16.msra.mxu0 0
          %1273 = vmatpush.bf16.msra.mxu0 0
          %1274 = vmatpush.bf16.msra.mxu0 %v1265
          %1275 = vmatmul.bf16.gmra.mxu0 %v1241
          %v1276 = vpop.f32.mrf.mxu0
          %v1277 = vadd.f32 0.0, %v1276
          %v1278 = vpop.f32.mrf.mxu0
          %v1279 = vadd.f32 0.0, %v1278
          %1280 = vmatmul.bf16.gmra.mxu0 %v1244
          %v1281 = vpop.f32.mrf.mxu0
          %v1282 = vadd.f32 0.0, %v1281
          %v1283 = vpop.f32.mrf.mxu0
          %v1284 = vadd.f32 0.0, %v1283
          %1285 = vmatmul.bf16.gmra.mxu0 %v1247
          %v1286 = vpop.f32.mrf.mxu0
          %v1287 = vadd.f32 0.0, %v1286
          %v1288 = vpop.f32.mrf.mxu0
          %v1289 = vadd.f32 0.0, %v1288
          %1290 = vmatmul.bf16.gmra.mxu0 %v1250
          %v1291 = vpop.f32.mrf.mxu0
          %v1292 = vadd.f32 0.0, %v1291
          %v1293 = vpop.f32.mrf.mxu0
          %v1294 = vadd.f32 0.0, %v1293
          %1295 = vmatmul.bf16.gmra.mxu0 %v1253
          %v1296 = vpop.f32.mrf.mxu0
          %v1297 = vadd.f32 0.0, %v1296
          %v1298 = vpop.f32.mrf.mxu0
          %v1299 = vadd.f32 0.0, %v1298
          %1300 = vmatmul.bf16.gmra.mxu0 %v1256
          %v1301 = vpop.f32.mrf.mxu0
          %v1302 = vadd.f32 0.0, %v1301
          %v1303 = vpop.f32.mrf.mxu0
          %v1304 = vadd.f32 0.0, %v1303
          %1305 = vmatmul.bf16.gmra.mxu0 %v1259
          %v1306 = vpop.f32.mrf.mxu0
          %v1307 = vadd.f32 0.0, %v1306
          %v1308 = vpop.f32.mrf.mxu0
          %v1309 = vadd.f32 0.0, %v1308
          %1310 = vmatmul.bf16.gmra.mxu0 %v1262
          %v1311 = vpop.f32.mrf.mxu0
          %v1312 = vadd.f32 0.0, %v1311
          %v1313 = vpop.f32.mrf.mxu0
          %v1314 = vadd.f32 0.0, %v1313
          %1315 = vdwg.mxu0
          %1316 = vxpose.xlu0.c.b16.start [1/8] %v1025, 128
          %1317 = vxpose.xlu0.c.b16.cont [2/8] 0, 128
          %1318 = vxpose.xlu0.c.b16.cont [3/8] 0, 128
          %1319 = vxpose.xlu0.c.b16.cont [4/8] 0, 128
          %1320 = vxpose.xlu0.c.b16.cont [5/8] 0, 128
          %1321 = vxpose.xlu0.c.b16.cont [6/8] 0, 128
          %1322 = vxpose.xlu0.c.b16.cont [7/8] 0, 128
          %1323 = vxpose.xlu0.c.b16.end [8/8] 0, 128
          %v1324 = vpop.trf.xlu0
          %v1325 = vpop.trf.xlu0
          %v1326 = vpop.trf.xlu0
          %v1327 = vpop.trf.xlu0
          %v1328 = vpop.trf.xlu0
          %v1329 = vpop.trf.xlu0
          %v1330 = vpop.trf.xlu0
          %v1331 = vpop.trf.xlu0
          %v1333 = vsel %vm1054, %v1324, 0
          %v1336 = vsel %vm1054, %v1325, 0
          %v1339 = vsel %vm1054, %v1326, 0
          %v1342 = vsel %vm1054, %v1327, 0
          %v1345 = vsel %vm1054, %v1328, 0
          %v1348 = vsel %vm1054, %v1329, 0
          %v1351 = vsel %vm1054, %v1330, 0
          %v1354 = vsel %vm1054, %v1331, 0
          %v1357 = vsel %vm1079, %v1031, 0
          %1359 = vmatpush.bf16.msra.mxu0 0
          %1360 = vmatpush.bf16.msra.mxu0 0
          %1361 = vmatpush.bf16.msra.mxu0 0
          %1362 = vmatpush.bf16.msra.mxu0 0
          %1363 = vmatpush.bf16.msra.mxu0 0
          %1364 = vmatpush.bf16.msra.mxu0 0
          %1365 = vmatpush.bf16.msra.mxu0 0
          %1366 = vmatpush.bf16.msra.mxu0 %v1357
          %1367 = vmatmul.bf16.gmra.mxu0 %v1333
          %v1368 = vpop.f32.mrf.mxu0
          %v1369 = vadd.f32 0.0, %v1368
          %v1370 = vpop.f32.mrf.mxu0
          %v1371 = vadd.f32 0.0, %v1370
          %1372 = vmatmul.bf16.gmra.mxu0 %v1336
          %v1373 = vpop.f32.mrf.mxu0
          %v1374 = vadd.f32 0.0, %v1373
          %v1375 = vpop.f32.mrf.mxu0
          %v1376 = vadd.f32 0.0, %v1375
          %1377 = vmatmul.bf16.gmra.mxu0 %v1339
          %v1378 = vpop.f32.mrf.mxu0
          %v1379 = vadd.f32 0.0, %v1378
          %v1380 = vpop.f32.mrf.mxu0
          %v1381 = vadd.f32 0.0, %v1380
          %1382 = vmatmul.bf16.gmra.mxu0 %v1342
          %v1383 = vpop.f32.mrf.mxu0
          %v1384 = vadd.f32 0.0, %v1383
          %v1385 = vpop.f32.mrf.mxu0
          %v1386 = vadd.f32 0.0, %v1385
          %1387 = vmatmul.bf16.gmra.mxu0 %v1345
          %v1388 = vpop.f32.mrf.mxu0
          %v1389 = vadd.f32 0.0, %v1388
          %v1390 = vpop.f32.mrf.mxu0
          %v1391 = vadd.f32 0.0, %v1390
          %1392 = vmatmul.bf16.gmra.mxu0 %v1348
          %v1393 = vpop.f32.mrf.mxu0
          %v1394 = vadd.f32 0.0, %v1393
          %v1395 = vpop.f32.mrf.mxu0
          %v1396 = vadd.f32 0.0, %v1395
          %1397 = vmatmul.bf16.gmra.mxu0 %v1351
          %v1398 = vpop.f32.mrf.mxu0
          %v1399 = vadd.f32 0.0, %v1398
          %v1400 = vpop.f32.mrf.mxu0
          %v1401 = vadd.f32 0.0, %v1400
          %1402 = vmatmul.bf16.gmra.mxu0 %v1354
          %v1403 = vpop.f32.mrf.mxu0
          %v1404 = vadd.f32 0.0, %v1403
          %v1405 = vpop.f32.mrf.mxu0
          %v1406 = vadd.f32 0.0, %v1405
          %1407 = vdwg.mxu0
          %1408 = vmax.xlane.f32.xlu0 %v1093
          %v1409 = vpop.xlane.xlu0 %1408
          %1410 = vmax.xlane.f32.xlu0 %v1095
          %v1411 = vpop.xlane.xlu0 %1410
          %1412 = vmax.xlane.f32.xlu0 %v1098
          %v1413 = vpop.xlane.xlu0 %1412
          %1414 = vmax.xlane.f32.xlu0 %v1100
          %v1415 = vpop.xlane.xlu0 %1414
          %1416 = vmax.xlane.f32.xlu0 %v1103
          %v1417 = vpop.xlane.xlu0 %1416
          %1418 = vmax.xlane.f32.xlu0 %v1105
          %v1419 = vpop.xlane.xlu0 %1418
          %1420 = vmax.xlane.f32.xlu0 %v1108
          %v1421 = vpop.xlane.xlu0 %1420
          %1422 = vmax.xlane.f32.xlu0 %v1110
          %v1423 = vpop.xlane.xlu0 %1422
          %1424 = vmax.xlane.f32.xlu0 %v1113
          %v1425 = vpop.xlane.xlu0 %1424
          %1426 = vmax.xlane.f32.xlu0 %v1115
          %v1427 = vpop.xlane.xlu0 %1426
          %1428 = vmax.xlane.f32.xlu0 %v1118
          %v1429 = vpop.xlane.xlu0 %1428
          %1430 = vmax.xlane.f32.xlu0 %v1120
          %v1431 = vpop.xlane.xlu0 %1430
          %1432 = vmax.xlane.f32.xlu0 %v1123
          %v1433 = vpop.xlane.xlu0 %1432
          %1434 = vmax.xlane.f32.xlu0 %v1125
          %v1435 = vpop.xlane.xlu0 %1434
          %1436 = vmax.xlane.f32.xlu0 %v1128
          %v1437 = vpop.xlane.xlu0 %1436
          %1438 = vmax.xlane.f32.xlu0 %v1130
          %v1439 = vpop.xlane.xlu0 %1438
          %1440 = vmax.xlane.f32.xlu0 %v1185
          %v1441 = vpop.xlane.xlu0 %1440
          %1442 = vmax.xlane.f32.xlu0 %v1187
          %v1443 = vpop.xlane.xlu0 %1442
          %1444 = vmax.xlane.f32.xlu0 %v1190
          %v1445 = vpop.xlane.xlu0 %1444
          %1446 = vmax.xlane.f32.xlu0 %v1192
          %v1447 = vpop.xlane.xlu0 %1446
          %1448 = vmax.xlane.f32.xlu0 %v1195
          %v1449 = vpop.xlane.xlu0 %1448
          %1450 = vmax.xlane.f32.xlu0 %v1197
          %v1451 = vpop.xlane.xlu0 %1450
          %1452 = vmax.xlane.f32.xlu0 %v1200
          %v1453 = vpop.xlane.xlu0 %1452
          %1454 = vmax.xlane.f32.xlu0 %v1202
          %v1455 = vpop.xlane.xlu0 %1454
          %1456 = vmax.xlane.f32.xlu0 %v1205
          %v1457 = vpop.xlane.xlu0 %1456
          %1458 = vmax.xlane.f32.xlu0 %v1207
          %v1459 = vpop.xlane.xlu0 %1458
          %1460 = vmax.xlane.f32.xlu0 %v1210
          %v1461 = vpop.xlane.xlu0 %1460
          %1462 = vmax.xlane.f32.xlu0 %v1212
          %v1463 = vpop.xlane.xlu0 %1462
          %1464 = vmax.xlane.f32.xlu0 %v1215
          %v1465 = vpop.xlane.xlu0 %1464
          %1466 = vmax.xlane.f32.xlu0 %v1217
          %v1467 = vpop.xlane.xlu0 %1466
          %1468 = vmax.xlane.f32.xlu0 %v1220
          %v1469 = vpop.xlane.xlu0 %1468
          %1470 = vmax.xlane.f32.xlu0 %v1222
          %v1471 = vpop.xlane.xlu0 %1470
          %1472 = vmax.xlane.f32.xlu0 %v1277
          %v1473 = vpop.xlane.xlu0 %1472
          %1474 = vmax.xlane.f32.xlu0 %v1279
          %v1475 = vpop.xlane.xlu0 %1474
          %1476 = vmax.xlane.f32.xlu0 %v1282
          %v1477 = vpop.xlane.xlu0 %1476
          %1478 = vmax.xlane.f32.xlu0 %v1284
          %v1479 = vpop.xlane.xlu0 %1478
          %1480 = vmax.xlane.f32.xlu0 %v1287
          %v1481 = vpop.xlane.xlu0 %1480
          %1482 = vmax.xlane.f32.xlu0 %v1289
          %v1483 = vpop.xlane.xlu0 %1482
          %1484 = vmax.xlane.f32.xlu0 %v1292
          %v1485 = vpop.xlane.xlu0 %1484
          %1486 = vmax.xlane.f32.xlu0 %v1294
          %v1487 = vpop.xlane.xlu0 %1486
          %1488 = vmax.xlane.f32.xlu0 %v1297
          %v1489 = vpop.xlane.xlu0 %1488
          %1490 = vmax.xlane.f32.xlu0 %v1299
          %v1491 = vpop.xlane.xlu0 %1490
          %1492 = vmax.xlane.f32.xlu0 %v1302
          %v1493 = vpop.xlane.xlu0 %1492
          %1494 = vmax.xlane.f32.xlu0 %v1304
          %v1495 = vpop.xlane.xlu0 %1494
          %1496 = vmax.xlane.f32.xlu0 %v1307
          %v1497 = vpop.xlane.xlu0 %1496
          %1498 = vmax.xlane.f32.xlu0 %v1309
          %v1499 = vpop.xlane.xlu0 %1498
          %1500 = vmax.xlane.f32.xlu0 %v1312
          %v1501 = vpop.xlane.xlu0 %1500
          %1502 = vmax.xlane.f32.xlu0 %v1314
          %v1503 = vpop.xlane.xlu0 %1502
          %1504 = vmax.xlane.f32.xlu0 %v1369
          %v1505 = vpop.xlane.xlu0 %1504
          %1506 = vmax.xlane.f32.xlu0 %v1371
          %v1507 = vpop.xlane.xlu0 %1506
          %1508 = vmax.xlane.f32.xlu0 %v1374
          %v1509 = vpop.xlane.xlu0 %1508
          %1510 = vmax.xlane.f32.xlu0 %v1376
          %v1511 = vpop.xlane.xlu0 %1510
          %1512 = vmax.xlane.f32.xlu0 %v1379
          %v1513 = vpop.xlane.xlu0 %1512
          %1514 = vmax.xlane.f32.xlu0 %v1381
          %v1515 = vpop.xlane.xlu0 %1514
          %1516 = vmax.xlane.f32.xlu0 %v1384
          %v1517 = vpop.xlane.xlu0 %1516
          %1518 = vmax.xlane.f32.xlu0 %v1386
          %v1519 = vpop.xlane.xlu0 %1518
          %1520 = vmax.xlane.f32.xlu0 %v1389
          %v1521 = vpop.xlane.xlu0 %1520
          %1522 = vmax.xlane.f32.xlu0 %v1391
          %v1523 = vpop.xlane.xlu0 %1522
          %1524 = vmax.xlane.f32.xlu0 %v1394
          %v1525 = vpop.xlane.xlu0 %1524
          %1526 = vmax.xlane.f32.xlu0 %v1396
          %v1527 = vpop.xlane.xlu0 %1526
          %1528 = vmax.xlane.f32.xlu0 %v1399
          %v1529 = vpop.xlane.xlu0 %1528
          %1530 = vmax.xlane.f32.xlu0 %v1401
          %v1531 = vpop.xlane.xlu0 %1530
          %1532 = vmax.xlane.f32.xlu0 %v1404
          %v1533 = vpop.xlane.xlu0 %1532
          %1534 = vmax.xlane.f32.xlu0 %v1406
          %v1535 = vpop.xlane.xlu0 %1534
          %v1536 = vsub.f32 %v1093, %v1409
          %v1537 = vsub.f32 %v1095, %v1411
          %v1538 = vsub.f32 %v1098, %v1413
          %v1539 = vsub.f32 %v1100, %v1415
          %v1540 = vsub.f32 %v1103, %v1417
          %v1541 = vsub.f32 %v1105, %v1419
          %v1542 = vsub.f32 %v1108, %v1421
          %v1543 = vsub.f32 %v1110, %v1423
          %v1544 = vsub.f32 %v1113, %v1425
          %v1545 = vsub.f32 %v1115, %v1427
          %v1546 = vsub.f32 %v1118, %v1429
          %v1547 = vsub.f32 %v1120, %v1431
          %v1548 = vsub.f32 %v1123, %v1433
          %v1549 = vsub.f32 %v1125, %v1435
          %v1550 = vsub.f32 %v1128, %v1437
          %v1551 = vsub.f32 %v1130, %v1439
          %v1552 = vsub.f32 %v1185, %v1441
          %v1553 = vsub.f32 %v1187, %v1443
          %v1554 = vsub.f32 %v1190, %v1445
          %v1555 = vsub.f32 %v1192, %v1447
          %v1556 = vsub.f32 %v1195, %v1449
          %v1557 = vsub.f32 %v1197, %v1451
          %v1558 = vsub.f32 %v1200, %v1453
          %v1559 = vsub.f32 %v1202, %v1455
          %v1560 = vsub.f32 %v1205, %v1457
          %v1561 = vsub.f32 %v1207, %v1459
          %v1562 = vsub.f32 %v1210, %v1461
          %v1563 = vsub.f32 %v1212, %v1463
          %v1564 = vsub.f32 %v1215, %v1465
          %v1565 = vsub.f32 %v1217, %v1467
          %v1566 = vsub.f32 %v1220, %v1469
          %v1567 = vsub.f32 %v1222, %v1471
          %v1568 = vsub.f32 %v1277, %v1473
          %v1569 = vsub.f32 %v1279, %v1475
          %v1570 = vsub.f32 %v1282, %v1477
          %v1571 = vsub.f32 %v1284, %v1479
          %v1572 = vsub.f32 %v1287, %v1481
          %v1573 = vsub.f32 %v1289, %v1483
          %v1574 = vsub.f32 %v1292, %v1485
          %v1575 = vsub.f32 %v1294, %v1487
          %v1576 = vsub.f32 %v1297, %v1489
          %v1577 = vsub.f32 %v1299, %v1491
          %v1578 = vsub.f32 %v1302, %v1493
          %v1579 = vsub.f32 %v1304, %v1495
          %v1580 = vsub.f32 %v1307, %v1497
          %v1581 = vsub.f32 %v1309, %v1499
          %v1582 = vsub.f32 %v1312, %v1501
          %v1583 = vsub.f32 %v1314, %v1503
          %v1584 = vsub.f32 %v1369, %v1505
          %v1585 = vsub.f32 %v1371, %v1507
          %v1586 = vsub.f32 %v1374, %v1509
          %v1587 = vsub.f32 %v1376, %v1511
          %v1588 = vsub.f32 %v1379, %v1513
          %v1589 = vsub.f32 %v1381, %v1515
          %v1590 = vsub.f32 %v1384, %v1517
          %v1591 = vsub.f32 %v1386, %v1519
          %v1592 = vsub.f32 %v1389, %v1521
          %v1593 = vsub.f32 %v1391, %v1523
          %v1594 = vsub.f32 %v1394, %v1525
          %v1595 = vsub.f32 %v1396, %v1527
          %v1596 = vsub.f32 %v1399, %v1529
          %v1597 = vsub.f32 %v1401, %v1531
          %v1598 = vsub.f32 %v1404, %v1533
          %v1599 = vsub.f32 %v1406, %v1535
          %v1600 = vmul.f32 %v1536, 1.442695
          %v1601 = vpow.pop %v1600
          %v1602 = vmul.f32 %v1537, 1.442695
          %v1603 = vpow.pop %v1602
          %v1604 = vmul.f32 %v1538, 1.442695
          %v1605 = vpow.pop %v1604
          %v1606 = vmul.f32 %v1539, 1.442695
          %v1607 = vpow.pop %v1606
          %v1608 = vmul.f32 %v1540, 1.442695
          %v1609 = vpow.pop %v1608
          %v1610 = vmul.f32 %v1541, 1.442695
          %v1611 = vpow.pop %v1610
          %v1612 = vmul.f32 %v1542, 1.442695
          %v1613 = vpow.pop %v1612
          %v1614 = vmul.f32 %v1543, 1.442695
          %v1615 = vpow.pop %v1614
          %v1616 = vmul.f32 %v1544, 1.442695
          %v1617 = vpow.pop %v1616
          %v1618 = vmul.f32 %v1545, 1.442695
          %v1619 = vpow.pop %v1618
          %v1620 = vmul.f32 %v1546, 1.442695
          %v1621 = vpow.pop %v1620
          %v1622 = vmul.f32 %v1547, 1.442695
          %v1623 = vpow.pop %v1622
          %v1624 = vmul.f32 %v1548, 1.442695
          %v1625 = vpow.pop %v1624
          %v1626 = vmul.f32 %v1549, 1.442695
          %v1627 = vpow.pop %v1626
          %v1628 = vmul.f32 %v1550, 1.442695
          %v1629 = vpow.pop %v1628
          %v1630 = vmul.f32 %v1551, 1.442695
          %v1631 = vpow.pop %v1630
          %v1632 = vmul.f32 %v1552, 1.442695
          %v1633 = vpow.pop %v1632
          %v1634 = vmul.f32 %v1553, 1.442695
          %v1635 = vpow.pop %v1634
          %v1636 = vmul.f32 %v1554, 1.442695
          %v1637 = vpow.pop %v1636
          %v1638 = vmul.f32 %v1555, 1.442695
          %v1639 = vpow.pop %v1638
          %v1640 = vmul.f32 %v1556, 1.442695
          %v1641 = vpow.pop %v1640
          %v1642 = vmul.f32 %v1557, 1.442695
          %v1643 = vpow.pop %v1642
          %v1644 = vmul.f32 %v1558, 1.442695
          %v1645 = vpow.pop %v1644
          %v1646 = vmul.f32 %v1559, 1.442695
          %v1647 = vpow.pop %v1646
          %v1648 = vmul.f32 %v1560, 1.442695
          %v1649 = vpow.pop %v1648
          %v1650 = vmul.f32 %v1561, 1.442695
          %v1651 = vpow.pop %v1650
          %v1652 = vmul.f32 %v1562, 1.442695
          %v1653 = vpow.pop %v1652
          %v1654 = vmul.f32 %v1563, 1.442695
          %v1655 = vpow.pop %v1654
          %v1656 = vmul.f32 %v1564, 1.442695
          %v1657 = vpow.pop %v1656
          %v1658 = vmul.f32 %v1565, 1.442695
          %v1659 = vpow.pop %v1658
          %v1660 = vmul.f32 %v1566, 1.442695
          %v1661 = vpow.pop %v1660
          %v1662 = vmul.f32 %v1567, 1.442695
          %v1663 = vpow.pop %v1662
          %v1664 = vmul.f32 %v1568, 1.442695
          %v1665 = vpow.pop %v1664
          %v1666 = vmul.f32 %v1569, 1.442695
          %v1667 = vpow.pop %v1666
          %v1668 = vmul.f32 %v1570, 1.442695
          %v1669 = vpow.pop %v1668
          %v1670 = vmul.f32 %v1571, 1.442695
          %v1671 = vpow.pop %v1670
          %v1672 = vmul.f32 %v1572, 1.442695
          %v1673 = vpow.pop %v1672
          %v1674 = vmul.f32 %v1573, 1.442695
          %v1675 = vpow.pop %v1674
          %v1676 = vmul.f32 %v1574, 1.442695
          %v1677 = vpow.pop %v1676
          %v1678 = vmul.f32 %v1575, 1.442695
          %v1679 = vpow.pop %v1678
          %v1680 = vmul.f32 %v1576, 1.442695
          %v1681 = vpow.pop %v1680
          %v1682 = vmul.f32 %v1577, 1.442695
          %v1683 = vpow.pop %v1682
          %v1684 = vmul.f32 %v1578, 1.442695
          %v1685 = vpow.pop %v1684
          %v1686 = vmul.f32 %v1579, 1.442695
          %v1687 = vpow.pop %v1686
          %v1688 = vmul.f32 %v1580, 1.442695
          %v1689 = vpow.pop %v1688
          %v1690 = vmul.f32 %v1581, 1.442695
          %v1691 = vpow.pop %v1690
          %v1692 = vmul.f32 %v1582, 1.442695
          %v1693 = vpow.pop %v1692
          %v1694 = vmul.f32 %v1583, 1.442695
          %v1695 = vpow.pop %v1694
          %v1696 = vmul.f32 %v1584, 1.442695
          %v1697 = vpow.pop %v1696
          %v1698 = vmul.f32 %v1585, 1.442695
          %v1699 = vpow.pop %v1698
          %v1700 = vmul.f32 %v1586, 1.442695
          %v1701 = vpow.pop %v1700
          %v1702 = vmul.f32 %v1587, 1.442695
          %v1703 = vpow.pop %v1702
          %v1704 = vmul.f32 %v1588, 1.442695
          %v1705 = vpow.pop %v1704
          %v1706 = vmul.f32 %v1589, 1.442695
          %v1707 = vpow.pop %v1706
          %v1708 = vmul.f32 %v1590, 1.442695
          %v1709 = vpow.pop %v1708
          %v1710 = vmul.f32 %v1591, 1.442695
          %v1711 = vpow.pop %v1710
          %v1712 = vmul.f32 %v1592, 1.442695
          %v1713 = vpow.pop %v1712
          %v1714 = vmul.f32 %v1593, 1.442695
          %v1715 = vpow.pop %v1714
          %v1716 = vmul.f32 %v1594, 1.442695
          %v1717 = vpow.pop %v1716
          %v1718 = vmul.f32 %v1595, 1.442695
          %v1719 = vpow.pop %v1718
          %v1720 = vmul.f32 %v1596, 1.442695
          %v1721 = vpow.pop %v1720
          %v1722 = vmul.f32 %v1597, 1.442695
          %v1723 = vpow.pop %v1722
          %v1724 = vmul.f32 %v1598, 1.442695
          %v1725 = vpow.pop %v1724
          %v1726 = vmul.f32 %v1599, 1.442695
          %v1727 = vpow.pop %v1726
          %1728 = vadd.xlane.f32.xlu0 %v1601
          %v1729 = vpop.xlane.xlu0 %1728
          %1730 = vadd.xlane.f32.xlu0 %v1603
          %v1731 = vpop.xlane.xlu0 %1730
          %1732 = vadd.xlane.f32.xlu0 %v1605
          %v1733 = vpop.xlane.xlu0 %1732
          %1734 = vadd.xlane.f32.xlu0 %v1607
          %v1735 = vpop.xlane.xlu0 %1734
          %1736 = vadd.xlane.f32.xlu0 %v1609
          %v1737 = vpop.xlane.xlu0 %1736
          %1738 = vadd.xlane.f32.xlu0 %v1611
          %v1739 = vpop.xlane.xlu0 %1738
          %1740 = vadd.xlane.f32.xlu0 %v1613
          %v1741 = vpop.xlane.xlu0 %1740
          %1742 = vadd.xlane.f32.xlu0 %v1615
          %v1743 = vpop.xlane.xlu0 %1742
          %1744 = vadd.xlane.f32.xlu0 %v1617
          %v1745 = vpop.xlane.xlu0 %1744
          %1746 = vadd.xlane.f32.xlu0 %v1619
          %v1747 = vpop.xlane.xlu0 %1746
          %1748 = vadd.xlane.f32.xlu0 %v1621
          %v1749 = vpop.xlane.xlu0 %1748
          %1750 = vadd.xlane.f32.xlu0 %v1623
          %v1751 = vpop.xlane.xlu0 %1750
          %1752 = vadd.xlane.f32.xlu0 %v1625
          %v1753 = vpop.xlane.xlu0 %1752
          %1754 = vadd.xlane.f32.xlu0 %v1627
          %v1755 = vpop.xlane.xlu0 %1754
          %1756 = vadd.xlane.f32.xlu0 %v1629
          %v1757 = vpop.xlane.xlu0 %1756
          %1758 = vadd.xlane.f32.xlu0 %v1631
          %v1759 = vpop.xlane.xlu0 %1758
          %1760 = vadd.xlane.f32.xlu0 %v1633
          %v1761 = vpop.xlane.xlu0 %1760
          %1762 = vadd.xlane.f32.xlu0 %v1635
          %v1763 = vpop.xlane.xlu0 %1762
          %1764 = vadd.xlane.f32.xlu0 %v1637
          %v1765 = vpop.xlane.xlu0 %1764
          %1766 = vadd.xlane.f32.xlu0 %v1639
          %v1767 = vpop.xlane.xlu0 %1766
          %1768 = vadd.xlane.f32.xlu0 %v1641
          %v1769 = vpop.xlane.xlu0 %1768
          %1770 = vadd.xlane.f32.xlu0 %v1643
          %v1771 = vpop.xlane.xlu0 %1770
          %1772 = vadd.xlane.f32.xlu0 %v1645
          %v1773 = vpop.xlane.xlu0 %1772
          %1774 = vadd.xlane.f32.xlu0 %v1647
          %v1775 = vpop.xlane.xlu0 %1774
          %1776 = vadd.xlane.f32.xlu0 %v1649
          %v1777 = vpop.xlane.xlu0 %1776
          %1778 = vadd.xlane.f32.xlu0 %v1651
          %v1779 = vpop.xlane.xlu0 %1778
          %1780 = vadd.xlane.f32.xlu0 %v1653
          %v1781 = vpop.xlane.xlu0 %1780
          %1782 = vadd.xlane.f32.xlu0 %v1655
          %v1783 = vpop.xlane.xlu0 %1782
          %1784 = vadd.xlane.f32.xlu0 %v1657
          %v1785 = vpop.xlane.xlu0 %1784
          %1786 = vadd.xlane.f32.xlu0 %v1659
          %v1787 = vpop.xlane.xlu0 %1786
          %1788 = vadd.xlane.f32.xlu0 %v1661
          %v1789 = vpop.xlane.xlu0 %1788
          %1790 = vadd.xlane.f32.xlu0 %v1663
          %v1791 = vpop.xlane.xlu0 %1790
          %1792 = vadd.xlane.f32.xlu0 %v1665
          %v1793 = vpop.xlane.xlu0 %1792
          %1794 = vadd.xlane.f32.xlu0 %v1667
          %v1795 = vpop.xlane.xlu0 %1794
          %1796 = vadd.xlane.f32.xlu0 %v1669
          %v1797 = vpop.xlane.xlu0 %1796
          %1798 = vadd.xlane.f32.xlu0 %v1671
          %v1799 = vpop.xlane.xlu0 %1798
          %1800 = vadd.xlane.f32.xlu0 %v1673
          %v1801 = vpop.xlane.xlu0 %1800
          %1802 = vadd.xlane.f32.xlu0 %v1675
          %v1803 = vpop.xlane.xlu0 %1802
          %1804 = vadd.xlane.f32.xlu0 %v1677
          %v1805 = vpop.xlane.xlu0 %1804
          %1806 = vadd.xlane.f32.xlu0 %v1679
          %v1807 = vpop.xlane.xlu0 %1806
          %1808 = vadd.xlane.f32.xlu0 %v1681
          %v1809 = vpop.xlane.xlu0 %1808
          %1810 = vadd.xlane.f32.xlu0 %v1683
          %v1811 = vpop.xlane.xlu0 %1810
          %1812 = vadd.xlane.f32.xlu0 %v1685
          %v1813 = vpop.xlane.xlu0 %1812
          %1814 = vadd.xlane.f32.xlu0 %v1687
          %v1815 = vpop.xlane.xlu0 %1814
          %1816 = vadd.xlane.f32.xlu0 %v1689
          %v1817 = vpop.xlane.xlu0 %1816
          %1818 = vadd.xlane.f32.xlu0 %v1691
          %v1819 = vpop.xlane.xlu0 %1818
          %1820 = vadd.xlane.f32.xlu0 %v1693
          %v1821 = vpop.xlane.xlu0 %1820
          %1822 = vadd.xlane.f32.xlu0 %v1695
          %v1823 = vpop.xlane.xlu0 %1822
          %1824 = vadd.xlane.f32.xlu0 %v1697
          %v1825 = vpop.xlane.xlu0 %1824
          %1826 = vadd.xlane.f32.xlu0 %v1699
          %v1827 = vpop.xlane.xlu0 %1826
          %1828 = vadd.xlane.f32.xlu0 %v1701
          %v1829 = vpop.xlane.xlu0 %1828
          %1830 = vadd.xlane.f32.xlu0 %v1703
          %v1831 = vpop.xlane.xlu0 %1830
          %1832 = vadd.xlane.f32.xlu0 %v1705
          %v1833 = vpop.xlane.xlu0 %1832
          %1834 = vadd.xlane.f32.xlu0 %v1707
          %v1835 = vpop.xlane.xlu0 %1834
          %1836 = vadd.xlane.f32.xlu0 %v1709
          %v1837 = vpop.xlane.xlu0 %1836
          %1838 = vadd.xlane.f32.xlu0 %v1711
          %v1839 = vpop.xlane.xlu0 %1838
          %1840 = vadd.xlane.f32.xlu0 %v1713
          %v1841 = vpop.xlane.xlu0 %1840
          %1842 = vadd.xlane.f32.xlu0 %v1715
          %v1843 = vpop.xlane.xlu0 %1842
          %1844 = vadd.xlane.f32.xlu0 %v1717
          %v1845 = vpop.xlane.xlu0 %1844
          %1846 = vadd.xlane.f32.xlu0 %v1719
          %v1847 = vpop.xlane.xlu0 %1846
          %1848 = vadd.xlane.f32.xlu0 %v1721
          %v1849 = vpop.xlane.xlu0 %1848
          %1850 = vadd.xlane.f32.xlu0 %v1723
          %v1851 = vpop.xlane.xlu0 %1850
          %1852 = vadd.xlane.f32.xlu0 %v1725
          %v1853 = vpop.xlane.xlu0 %1852
          %1854 = vadd.xlane.f32.xlu0 %v1727
          %v1855 = vpop.xlane.xlu0 %1854
          %v1856 = vrcp.pop %v1729
          %v1857 = vrcp.pop %v1731
          %v1858 = vrcp.pop %v1733
          %v1859 = vrcp.pop %v1735
          %v1860 = vrcp.pop %v1737
          %v1861 = vrcp.pop %v1739
          %v1862 = vrcp.pop %v1741
          %v1863 = vrcp.pop %v1743
          %v1864 = vrcp.pop %v1745
          %v1865 = vrcp.pop %v1747
          %v1866 = vrcp.pop %v1749
          %v1867 = vrcp.pop %v1751
          %v1868 = vrcp.pop %v1753
          %v1869 = vrcp.pop %v1755
          %v1870 = vrcp.pop %v1757
          %v1871 = vrcp.pop %v1759
          %v1872 = vrcp.pop %v1761
          %v1873 = vrcp.pop %v1763
          %v1874 = vrcp.pop %v1765
          %v1875 = vrcp.pop %v1767
          %v1876 = vrcp.pop %v1769
          %v1877 = vrcp.pop %v1771
          %v1878 = vrcp.pop %v1773
          %v1879 = vrcp.pop %v1775
          %v1880 = vrcp.pop %v1777
          %v1881 = vrcp.pop %v1779
          %v1882 = vrcp.pop %v1781
          %v1883 = vrcp.pop %v1783
          %v1884 = vrcp.pop %v1785
          %v1885 = vrcp.pop %v1787
          %v1886 = vrcp.pop %v1789
          %v1887 = vrcp.pop %v1791
          %v1888 = vrcp.pop %v1793
          %v1889 = vrcp.pop %v1795
          %v1890 = vrcp.pop %v1797
          %v1891 = vrcp.pop %v1799
          %v1892 = vrcp.pop %v1801
          %v1893 = vrcp.pop %v1803
          %v1894 = vrcp.pop %v1805
          %v1895 = vrcp.pop %v1807
          %v1896 = vrcp.pop %v1809
          %v1897 = vrcp.pop %v1811
          %v1898 = vrcp.pop %v1813
          %v1899 = vrcp.pop %v1815
          %v1900 = vrcp.pop %v1817
          %v1901 = vrcp.pop %v1819
          %v1902 = vrcp.pop %v1821
          %v1903 = vrcp.pop %v1823
          %v1904 = vrcp.pop %v1825
          %v1905 = vrcp.pop %v1827
          %v1906 = vrcp.pop %v1829
          %v1907 = vrcp.pop %v1831
          %v1908 = vrcp.pop %v1833
          %v1909 = vrcp.pop %v1835
          %v1910 = vrcp.pop %v1837
          %v1911 = vrcp.pop %v1839
          %v1912 = vrcp.pop %v1841
          %v1913 = vrcp.pop %v1843
          %v1914 = vrcp.pop %v1845
          %v1915 = vrcp.pop %v1847
          %v1916 = vrcp.pop %v1849
          %v1917 = vrcp.pop %v1851
          %v1918 = vrcp.pop %v1853
          %v1919 = vrcp.pop %v1855
          %v1920 = vmul.f32 %v1601, %v1856
          %v1921 = vmul.f32 %v1603, %v1857
          %v1922 = vmul.f32 %v1605, %v1858
          %v1923 = vmul.f32 %v1607, %v1859
          %v1924 = vmul.f32 %v1609, %v1860
          %v1925 = vmul.f32 %v1611, %v1861
          %v1926 = vmul.f32 %v1613, %v1862
          %v1927 = vmul.f32 %v1615, %v1863
          %v1928 = vmul.f32 %v1617, %v1864
          %v1929 = vmul.f32 %v1619, %v1865
          %v1930 = vmul.f32 %v1621, %v1866
          %v1931 = vmul.f32 %v1623, %v1867
          %v1932 = vmul.f32 %v1625, %v1868
          %v1933 = vmul.f32 %v1627, %v1869
          %v1934 = vmul.f32 %v1629, %v1870
          %v1935 = vmul.f32 %v1631, %v1871
          %v1936 = vmul.f32 %v1633, %v1872
          %v1937 = vmul.f32 %v1635, %v1873
          %v1938 = vmul.f32 %v1637, %v1874
          %v1939 = vmul.f32 %v1639, %v1875
          %v1940 = vmul.f32 %v1641, %v1876
          %v1941 = vmul.f32 %v1643, %v1877
          %v1942 = vmul.f32 %v1645, %v1878
          %v1943 = vmul.f32 %v1647, %v1879
          %v1944 = vmul.f32 %v1649, %v1880
          %v1945 = vmul.f32 %v1651, %v1881
          %v1946 = vmul.f32 %v1653, %v1882
          %v1947 = vmul.f32 %v1655, %v1883
          %v1948 = vmul.f32 %v1657, %v1884
          %v1949 = vmul.f32 %v1659, %v1885
          %v1950 = vmul.f32 %v1661, %v1886
          %v1951 = vmul.f32 %v1663, %v1887
          %v1952 = vmul.f32 %v1665, %v1888
          %v1953 = vmul.f32 %v1667, %v1889
          %v1954 = vmul.f32 %v1669, %v1890
          %v1955 = vmul.f32 %v1671, %v1891
          %v1956 = vmul.f32 %v1673, %v1892
          %v1957 = vmul.f32 %v1675, %v1893
          %v1958 = vmul.f32 %v1677, %v1894
          %v1959 = vmul.f32 %v1679, %v1895
          %v1960 = vmul.f32 %v1681, %v1896
          %v1961 = vmul.f32 %v1683, %v1897
          %v1962 = vmul.f32 %v1685, %v1898
          %v1963 = vmul.f32 %v1687, %v1899
          %v1964 = vmul.f32 %v1689, %v1900
          %v1965 = vmul.f32 %v1691, %v1901
          %v1966 = vmul.f32 %v1693, %v1902
          %v1967 = vmul.f32 %v1695, %v1903
          %v1968 = vmul.f32 %v1697, %v1904
          %v1969 = vmul.f32 %v1699, %v1905
          %v1970 = vmul.f32 %v1701, %v1906
          %v1971 = vmul.f32 %v1703, %v1907
          %v1972 = vmul.f32 %v1705, %v1908
          %v1973 = vmul.f32 %v1707, %v1909
          %v1974 = vmul.f32 %v1709, %v1910
          %v1975 = vmul.f32 %v1711, %v1911
          %v1976 = vmul.f32 %v1713, %v1912
          %v1977 = vmul.f32 %v1715, %v1913
          %v1978 = vmul.f32 %v1717, %v1914
          %v1979 = vmul.f32 %v1719, %v1915
          %v1980 = vmul.f32 %v1721, %v1916
          %v1981 = vmul.f32 %v1723, %v1917
          %v1982 = vmul.f32 %v1725, %v1918
          %v1983 = vmul.f32 %v1727, %v1919
          %v1984 = vpack.c.bf16 %v1920, %v1920
          %v1985 = vpack.c.bf16 %v1921, %v1921
          %v1986 = vpack.c.bf16 %v1922, %v1922
          %v1987 = vpack.c.bf16 %v1923, %v1923
          %v1988 = vpack.c.bf16 %v1924, %v1924
          %v1989 = vpack.c.bf16 %v1925, %v1925
          %v1990 = vpack.c.bf16 %v1926, %v1926
          %v1991 = vpack.c.bf16 %v1927, %v1927
          %v1992 = vpack.c.bf16 %v1928, %v1928
          %v1993 = vpack.c.bf16 %v1929, %v1929
          %v1994 = vpack.c.bf16 %v1930, %v1930
          %v1995 = vpack.c.bf16 %v1931, %v1931
          %v1996 = vpack.c.bf16 %v1932, %v1932
          %v1997 = vpack.c.bf16 %v1933, %v1933
          %v1998 = vpack.c.bf16 %v1934, %v1934
          %v1999 = vpack.c.bf16 %v1935, %v1935
          %v2000 = vpack.c.bf16 %v1936, %v1936
          %v2001 = vpack.c.bf16 %v1937, %v1937
          %v2002 = vpack.c.bf16 %v1938, %v1938
          %v2003 = vpack.c.bf16 %v1939, %v1939
          %v2004 = vpack.c.bf16 %v1940, %v1940
          %v2005 = vpack.c.bf16 %v1941, %v1941
          %v2006 = vpack.c.bf16 %v1942, %v1942
          %v2007 = vpack.c.bf16 %v1943, %v1943
          %v2008 = vpack.c.bf16 %v1944, %v1944
          %v2009 = vpack.c.bf16 %v1945, %v1945
          %v2010 = vpack.c.bf16 %v1946, %v1946
          %v2011 = vpack.c.bf16 %v1947, %v1947
          %v2012 = vpack.c.bf16 %v1948, %v1948
          %v2013 = vpack.c.bf16 %v1949, %v1949
          %v2014 = vpack.c.bf16 %v1950, %v1950
          %v2015 = vpack.c.bf16 %v1951, %v1951
          %v2016 = vpack.c.bf16 %v1952, %v1952
          %v2017 = vpack.c.bf16 %v1953, %v1953
          %v2018 = vpack.c.bf16 %v1954, %v1954
          %v2019 = vpack.c.bf16 %v1955, %v1955
          %v2020 = vpack.c.bf16 %v1956, %v1956
          %v2021 = vpack.c.bf16 %v1957, %v1957
          %v2022 = vpack.c.bf16 %v1958, %v1958
          %v2023 = vpack.c.bf16 %v1959, %v1959
          %v2024 = vpack.c.bf16 %v1960, %v1960
          %v2025 = vpack.c.bf16 %v1961, %v1961
          %v2026 = vpack.c.bf16 %v1962, %v1962
          %v2027 = vpack.c.bf16 %v1963, %v1963
          %v2028 = vpack.c.bf16 %v1964, %v1964
          %v2029 = vpack.c.bf16 %v1965, %v1965
          %v2030 = vpack.c.bf16 %v1966, %v1966
          %v2031 = vpack.c.bf16 %v1967, %v1967
          %v2032 = vpack.c.bf16 %v1968, %v1968
          %v2033 = vpack.c.bf16 %v1969, %v1969
          %v2034 = vpack.c.bf16 %v1970, %v1970
          %v2035 = vpack.c.bf16 %v1971, %v1971
          %v2036 = vpack.c.bf16 %v1972, %v1972
          %v2037 = vpack.c.bf16 %v1973, %v1973
          %v2038 = vpack.c.bf16 %v1974, %v1974
          %v2039 = vpack.c.bf16 %v1975, %v1975
          %v2040 = vpack.c.bf16 %v1976, %v1976
          %v2041 = vpack.c.bf16 %v1977, %v1977
          %v2042 = vpack.c.bf16 %v1978, %v1978
          %v2043 = vpack.c.bf16 %v1979, %v1979
          %v2044 = vpack.c.bf16 %v1980, %v1980
          %v2045 = vpack.c.bf16 %v1981, %v1981
          %v2046 = vpack.c.bf16 %v1982, %v1982
          %v2047 = vpack.c.bf16 %v1983, %v1983
          %v2064 = vunpack.c.l.b16 %v1984
          %v2065 = vunpack.c.l.b16 %v1985
          %v2066 = vunpack.c.l.b16 %v1986
          %v2067 = vunpack.c.l.b16 %v1987
          %v2068 = vunpack.c.l.b16 %v1988
          %v2069 = vunpack.c.l.b16 %v1989
          %v2070 = vunpack.c.l.b16 %v1990
          %v2071 = vunpack.c.l.b16 %v1991
          %v2072 = vunpack.c.l.b16 %v1992
          %v2073 = vunpack.c.l.b16 %v1993
          %v2074 = vunpack.c.l.b16 %v1994
          %v2075 = vunpack.c.l.b16 %v1995
          %v2076 = vunpack.c.l.b16 %v1996
          %v2077 = vunpack.c.l.b16 %v1997
          %v2078 = vunpack.c.l.b16 %v1998
          %v2079 = vunpack.c.l.b16 %v1999
          %v2080 = vpack.c.b16 %v2065, %v2064
          %v2081 = vpack.c.b16 %v2067, %v2066
          %v2082 = vpack.c.b16 %v2069, %v2068
          %v2083 = vpack.c.b16 %v2071, %v2070
          %v2084 = vpack.c.b16 %v2073, %v2072
          %v2085 = vpack.c.b16 %v2075, %v2074
          %v2086 = vpack.c.b16 %v2077, %v2076
          %v2087 = vpack.c.b16 %v2079, %v2078
          %2096 = vmatpush.bf16.xpose.msra.mxu0 %v2087
          %2097 = vmatpush.bf16.xpose.msra.mxu0 %v2086
          %2098 = vmatpush.bf16.xpose.msra.mxu0 %v2085
          %2099 = vmatpush.bf16.xpose.msra.mxu0 %v2084
          %2100 = vmatpush.bf16.xpose.msra.mxu0 %v2083
          %2101 = vmatpush.bf16.xpose.msra.mxu0 %v2082
          %2102 = vmatpush.bf16.xpose.msra.mxu0 %v2081
          %2103 = vmatpush.bf16.xpose.msra.mxu0 %v2080
          %2104 = vmatmul.bf16.gmra.mxu0 %v1034
          %v2105 = vpop.f32.mrf.mxu0
          %v2106 = vadd.f32 0.0, %v2105
          %v2107 = vpop.f32.mrf.mxu0
          %2108 = vdwg.mxu0
          %v2125 = vunpack.c.l.b16 %v2000
          %v2126 = vunpack.c.l.b16 %v2001
          %v2127 = vunpack.c.l.b16 %v2002
          %v2128 = vunpack.c.l.b16 %v2003
          %v2129 = vunpack.c.l.b16 %v2004
          %v2130 = vunpack.c.l.b16 %v2005
          %v2131 = vunpack.c.l.b16 %v2006
          %v2132 = vunpack.c.l.b16 %v2007
          %v2133 = vunpack.c.l.b16 %v2008
          %v2134 = vunpack.c.l.b16 %v2009
          %v2135 = vunpack.c.l.b16 %v2010
          %v2136 = vunpack.c.l.b16 %v2011
          %v2137 = vunpack.c.l.b16 %v2012
          %v2138 = vunpack.c.l.b16 %v2013
          %v2139 = vunpack.c.l.b16 %v2014
          %v2140 = vunpack.c.l.b16 %v2015
          %v2141 = vpack.c.b16 %v2126, %v2125
          %v2142 = vpack.c.b16 %v2128, %v2127
          %v2143 = vpack.c.b16 %v2130, %v2129
          %v2144 = vpack.c.b16 %v2132, %v2131
          %v2145 = vpack.c.b16 %v2134, %v2133
          %v2146 = vpack.c.b16 %v2136, %v2135
          %v2147 = vpack.c.b16 %v2138, %v2137
          %v2148 = vpack.c.b16 %v2140, %v2139
          %2157 = vmatpush.bf16.xpose.msra.mxu0 %v2148
          %2158 = vmatpush.bf16.xpose.msra.mxu0 %v2147
          %2159 = vmatpush.bf16.xpose.msra.mxu0 %v2146
          %2160 = vmatpush.bf16.xpose.msra.mxu0 %v2145
          %2161 = vmatpush.bf16.xpose.msra.mxu0 %v2144
          %2162 = vmatpush.bf16.xpose.msra.mxu0 %v2143
          %2163 = vmatpush.bf16.xpose.msra.mxu0 %v2142
          %2164 = vmatpush.bf16.xpose.msra.mxu0 %v2141
          %2165 = vmatmul.bf16.gmra.mxu0 %v1035
          %v2166 = vpop.f32.mrf.mxu0
          %v2167 = vadd.f32 0.0, %v2166
          %v2168 = vpop.f32.mrf.mxu0
          %2169 = vdwg.mxu0
          %v2186 = vunpack.c.l.b16 %v2016
          %v2187 = vunpack.c.l.b16 %v2017
          %v2188 = vunpack.c.l.b16 %v2018
          %v2189 = vunpack.c.l.b16 %v2019
          %v2190 = vunpack.c.l.b16 %v2020
          %v2191 = vunpack.c.l.b16 %v2021
          %v2192 = vunpack.c.l.b16 %v2022
          %v2193 = vunpack.c.l.b16 %v2023
          %v2194 = vunpack.c.l.b16 %v2024
          %v2195 = vunpack.c.l.b16 %v2025
          %v2196 = vunpack.c.l.b16 %v2026
          %v2197 = vunpack.c.l.b16 %v2027
          %v2198 = vunpack.c.l.b16 %v2028
          %v2199 = vunpack.c.l.b16 %v2029
          %v2200 = vunpack.c.l.b16 %v2030
          %v2201 = vunpack.c.l.b16 %v2031
          %v2202 = vpack.c.b16 %v2187, %v2186
          %v2203 = vpack.c.b16 %v2189, %v2188
          %v2204 = vpack.c.b16 %v2191, %v2190
          %v2205 = vpack.c.b16 %v2193, %v2192
          %v2206 = vpack.c.b16 %v2195, %v2194
          %v2207 = vpack.c.b16 %v2197, %v2196
          %v2208 = vpack.c.b16 %v2199, %v2198
          %v2209 = vpack.c.b16 %v2201, %v2200
          %2218 = vmatpush.bf16.xpose.msra.mxu0 %v2209
          %2219 = vmatpush.bf16.xpose.msra.mxu0 %v2208
          %2220 = vmatpush.bf16.xpose.msra.mxu0 %v2207
          %2221 = vmatpush.bf16.xpose.msra.mxu0 %v2206
          %2222 = vmatpush.bf16.xpose.msra.mxu0 %v2205
          %2223 = vmatpush.bf16.xpose.msra.mxu0 %v2204
          %2224 = vmatpush.bf16.xpose.msra.mxu0 %v2203
          %2225 = vmatpush.bf16.xpose.msra.mxu0 %v2202
          %2226 = vmatmul.bf16.gmra.mxu0 %v1036
          %v2227 = vpop.f32.mrf.mxu0
          %v2228 = vadd.f32 0.0, %v2227
          %v2229 = vpop.f32.mrf.mxu0
          %2230 = vdwg.mxu0
          %v2247 = vunpack.c.l.b16 %v2032
          %v2248 = vunpack.c.l.b16 %v2033
          %v2249 = vunpack.c.l.b16 %v2034
          %v2250 = vunpack.c.l.b16 %v2035
          %v2251 = vunpack.c.l.b16 %v2036
          %v2252 = vunpack.c.l.b16 %v2037
          %v2253 = vunpack.c.l.b16 %v2038
          %v2254 = vunpack.c.l.b16 %v2039
          %v2255 = vunpack.c.l.b16 %v2040
          %v2256 = vunpack.c.l.b16 %v2041
          %v2257 = vunpack.c.l.b16 %v2042
          %v2258 = vunpack.c.l.b16 %v2043
          %v2259 = vunpack.c.l.b16 %v2044
          %v2260 = vunpack.c.l.b16 %v2045
          %v2261 = vunpack.c.l.b16 %v2046
          %v2262 = vunpack.c.l.b16 %v2047
          %v2263 = vpack.c.b16 %v2248, %v2247
          %v2264 = vpack.c.b16 %v2250, %v2249
          %v2265 = vpack.c.b16 %v2252, %v2251
          %v2266 = vpack.c.b16 %v2254, %v2253
          %v2267 = vpack.c.b16 %v2256, %v2255
          %v2268 = vpack.c.b16 %v2258, %v2257
          %v2269 = vpack.c.b16 %v2260, %v2259
          %v2270 = vpack.c.b16 %v2262, %v2261
          %2279 = vmatpush.bf16.xpose.msra.mxu0 %v2270
          %2280 = vmatpush.bf16.xpose.msra.mxu0 %v2269
          %2281 = vmatpush.bf16.xpose.msra.mxu0 %v2268
          %2282 = vmatpush.bf16.xpose.msra.mxu0 %v2267
          %2283 = vmatpush.bf16.xpose.msra.mxu0 %v2266
          %2284 = vmatpush.bf16.xpose.msra.mxu0 %v2265
          %2285 = vmatpush.bf16.xpose.msra.mxu0 %v2264
          %2286 = vmatpush.bf16.xpose.msra.mxu0 %v2263
          %2287 = vmatmul.bf16.gmra.mxu0 %v1037
          %v2288 = vpop.f32.mrf.mxu0
          %v2289 = vadd.f32 0.0, %v2288
          %v2290 = vpop.f32.mrf.mxu0
          %2291 = vdwg.mxu0
          %v2292 = vpack.c.bf16 %v2106, %v2106
          %v2293 = vpack.c.bf16 %v2167, %v2167
          %v2294 = vpack.c.bf16 %v2228, %v2228
          %v2295 = vpack.c.bf16 %v2289, %v2289
          %s2296 = smul.addr %s1018, 4
          %s2297 = scalar_lea.vmem [#allocation6], %s2296
          %2298 = vst [vmem:[%s2297] sm:$0xf] %v2292
          %2299 = vst [vmem:[%s2297 + $0x10] sm:$0xf] %v2293
          %2300 = vst [vmem:[%s2297 + $0x20] sm:$0xf] %v2294
          %2301 = vst [vmem:[%s2297 + $0x30] sm:$0xf] %v2295
        $region57: #{tpu_custom_call.1} parent=47 // loop_footer
          %s1016 = sadd.s32 1, %s1012
        $region58: #{tpu_custom_call.1} parent=47 // loop_footer_branch
          %1011 = sbr.rel target = $region54
        $region59: #{tpu_custom_call.1} parent=47 // loop_exit
          _
        %v2302 = vld [vmem:[%s5] sm:$0xf]
        %v2303 = vld [vmem:[%s5 + $0x4] sm:$0xf]
        %v2304 = vld [vmem:[%s5 + $0x8] sm:$0xf]
        %v2305 = vld [vmem:[%s5 + $0xc] sm:$0xf]
        %v2306 = vld [vmem:[#allocation6] sm:$0xff]
        %v2307 = vld [vmem:[#allocation6 + $0x8] sm:$0xff]
        %v2308 = vld [vmem:[#allocation6 + $0x10] sm:$0xff]
        %v2309 = vld [vmem:[#allocation6 + $0x18] sm:$0xff]
        %v2310 = vld [vmem:[#allocation6 + $0x20] sm:$0xff]
        %v2311 = vld [vmem:[#allocation6 + $0x28] sm:$0xff]
        %v2312 = vld [vmem:[#allocation6 + $0x30] sm:$0xff]
        %v2313 = vld [vmem:[#allocation6 + $0x38] sm:$0xff]
        %v2314 = vld [vmem:[%s6] sm:$0xff]
        %v2315 = vld [vmem:[%s6 + $0x8] sm:$0xff]
        %v2316 = vld [vmem:[%s6 + $0x10] sm:$0xff]
        %v2317 = vld [vmem:[%s6 + $0x18] sm:$0xff]
        %2319 = vset.pattern.permute.xlu0 0
        %2320 = vperm.xlu0 %2319, %v2314
        %v2321 = vpop.permute.xlu0 %2320
        %2324 = vset.pattern.permute.xlu0 0
        %2325 = vperm.xlu0 %2324, %v2315
        %v2326 = vpop.permute.xlu0 %2325
        %2329 = vset.pattern.permute.xlu0 0
        %2330 = vperm.xlu0 %2329, %v2316
        %v2331 = vpop.permute.xlu0 %2330
        %2334 = vset.pattern.permute.xlu0 0
        %2335 = vperm.xlu0 %2334, %v2317
        %v2336 = vpop.permute.xlu0 %2335
        %v2342 = vunpack.c.l.b16 %v2302
        %v2343 = vunpack.c.l.b16 %v2303
        %v2344 = vunpack.c.l.b16 %v2304
        %v2345 = vunpack.c.l.b16 %v2305
        %v2346 = vpack.c.b16 %v2343, %v2342
        %v2347 = vpack.c.b16 %v2345, %v2344
        %v2356 = vunpack.c.l.b16 %v2306
        %v2357 = vunpack.c.h.b16 %v2306
        %v2358 = vunpack.c.l.b16 %v2307
        %v2359 = vunpack.c.h.b16 %v2307
        %v2360 = vunpack.c.l.b16 %v2308
        %v2361 = vunpack.c.h.b16 %v2308
        %v2362 = vunpack.c.l.b16 %v2309
        %v2363 = vunpack.c.h.b16 %v2309
        %v2364 = vunpack.c.l.b16 %v2310
        %v2365 = vunpack.c.h.b16 %v2310
        %v2366 = vunpack.c.l.b16 %v2311
        %v2367 = vunpack.c.h.b16 %v2311
        %v2368 = vunpack.c.l.b16 %v2312
        %v2369 = vunpack.c.h.b16 %v2312
        %v2370 = vunpack.c.l.b16 %v2313
        %v2371 = vunpack.c.h.b16 %v2313
        %v2372 = vpack.c.b16 %v2360, %v2356
        %v2373 = vpack.c.b16 %v2361, %v2357
        %v2374 = vpack.c.b16 %v2362, %v2358
        %v2375 = vpack.c.b16 %v2363, %v2359
        %v2376 = vpack.c.b16 %v2368, %v2364
        %v2377 = vpack.c.b16 %v2369, %v2365
        %v2378 = vpack.c.b16 %v2370, %v2366
        %v2379 = vpack.c.b16 %v2371, %v2367
        %v2389 = vsel %vm772, %v2346, 0
        %v2392 = vsel %vm772, %v2347, 0
        %2394 = vmatpush.bf16.msra.mxu0 0
        %2395 = vmatpush.bf16.msra.mxu0 0
        %2396 = vmatpush.bf16.msra.mxu0 0
        %2397 = vmatpush.bf16.msra.mxu0 0
        %2398 = vmatpush.bf16.msra.mxu0 0
        %2399 = vmatpush.bf16.msra.mxu0 0
        %2400 = vmatpush.bf16.msra.mxu0 %v2376
        %2401 = vmatpush.bf16.msra.mxu0 %v2372
        %2402 = vmatmul.bf16.gmra.mxu0 %v2389
        %v2403 = vpop.f32.mrf.mxu0
        %v2404 = vadd.f32 %v2321, %v2403
        %v2405 = vpop.f32.mrf.mxu0
        %v2406 = vadd.f32 %v2326, %v2405
        %2407 = vmatmul.bf16.gmra.mxu0 %v2392
        %v2408 = vpop.f32.mrf.mxu0
        %v2409 = vadd.f32 %v2331, %v2408
        %v2410 = vpop.f32.mrf.mxu0
        %v2411 = vadd.f32 %v2336, %v2410
        %2412 = vdwg.mxu0
        %2413 = vmatpush.bf16.msra.mxu0 0
        %2414 = vmatpush.bf16.msra.mxu0 0
        %2415 = vmatpush.bf16.msra.mxu0 0
        %2416 = vmatpush.bf16.msra.mxu0 0
        %2417 = vmatpush.bf16.msra.mxu0 0
        %2418 = vmatpush.bf16.msra.mxu0 0
        %2419 = vmatpush.bf16.msra.mxu0 %v2377
        %2420 = vmatpush.bf16.msra.mxu0 %v2373
        %2421 = vmatmul.bf16.gmra.mxu0 %v2389
        %v2422 = vpop.f32.mrf.mxu0
        %v2423 = vadd.f32 %v2321, %v2422
        %v2424 = vpop.f32.mrf.mxu0
        %v2425 = vadd.f32 %v2326, %v2424
        %2426 = vmatmul.bf16.gmra.mxu0 %v2392
        %v2427 = vpop.f32.mrf.mxu0
        %v2428 = vadd.f32 %v2331, %v2427
        %v2429 = vpop.f32.mrf.mxu0
        %v2430 = vadd.f32 %v2336, %v2429
        %2431 = vdwg.mxu0
        %2432 = vmatpush.bf16.msra.mxu0 0
        %2433 = vmatpush.bf16.msra.mxu0 0
        %2434 = vmatpush.bf16.msra.mxu0 0
        %2435 = vmatpush.bf16.msra.mxu0 0
        %2436 = vmatpush.bf16.msra.mxu0 0
        %2437 = vmatpush.bf16.msra.mxu0 0
        %2438 = vmatpush.bf16.msra.mxu0 %v2378
        %2439 = vmatpush.bf16.msra.mxu0 %v2374
        %2440 = vmatmul.bf16.gmra.mxu0 %v2389
        %v2441 = vpop.f32.mrf.mxu0
        %v2442 = vadd.f32 %v2321, %v2441
        %v2443 = vpop.f32.mrf.mxu0
        %v2444 = vadd.f32 %v2326, %v2443
        %2445 = vmatmul.bf16.gmra.mxu0 %v2392
        %v2446 = vpop.f32.mrf.mxu0
        %v2447 = vadd.f32 %v2331, %v2446
        %v2448 = vpop.f32.mrf.mxu0
        %v2449 = vadd.f32 %v2336, %v2448
        %2450 = vdwg.mxu0
        %2451 = vmatpush.bf16.msra.mxu0 0
        %2452 = vmatpush.bf16.msra.mxu0 0
        %2453 = vmatpush.bf16.msra.mxu0 0
        %2454 = vmatpush.bf16.msra.mxu0 0
        %2455 = vmatpush.bf16.msra.mxu0 0
        %2456 = vmatpush.bf16.msra.mxu0 0
        %2457 = vmatpush.bf16.msra.mxu0 %v2379
        %2458 = vmatpush.bf16.msra.mxu0 %v2375
        %2459 = vmatmul.bf16.gmra.mxu0 %v2389
        %v2460 = vpop.f32.mrf.mxu0
        %v2461 = vadd.f32 %v2321, %v2460
        %v2462 = vpop.f32.mrf.mxu0
        %v2463 = vadd.f32 %v2326, %v2462
        %2464 = vmatmul.bf16.gmra.mxu0 %v2392
        %v2465 = vpop.f32.mrf.mxu0
        %v2466 = vadd.f32 %v2331, %v2465
        %v2467 = vpop.f32.mrf.mxu0
        %v2468 = vadd.f32 %v2336, %v2467
        %2469 = vdwg.mxu0
        %v2470 = vld [vmem:[%s268] sm:$0xff]
        %v2471 = vld [vmem:[%s268 + $0x8] sm:$0xff]
        %v2472 = vld [vmem:[%s268 + $0x10] sm:$0xff]
        %v2473 = vld [vmem:[%s268 + $0x18] sm:$0xff]
        %v2474 = vadd.f32 %v2470, %v2404
        %v2475 = vadd.f32 %v2471, %v2406
        %v2476 = vadd.f32 %v2472, %v2409
        %v2477 = vadd.f32 %v2473, %v2411
        %2478 = vst [vmem:[%s299] sm:$0xff] %v2474
        %2479 = vst [vmem:[%s299 + $0x8] sm:$0xff] %v2475
        %2480 = vst [vmem:[%s299 + $0x10] sm:$0xff] %v2476
        %2481 = vst [vmem:[%s299 + $0x18] sm:$0xff] %v2477
        %s2482 = scalar_lea.vmem %s268, 32 [#allocation7]
        %v2483 = vld [vmem:[%s2482] sm:$0xff]
        %v2484 = vld [vmem:[%s2482 + $0x8] sm:$0xff]
        %v2485 = vld [vmem:[%s2482 + $0x10] sm:$0xff]
        %v2486 = vld [vmem:[%s2482 + $0x18] sm:$0xff]
        %v2487 = vadd.f32 %v2483, %v2423
        %v2488 = vadd.f32 %v2484, %v2425
        %v2489 = vadd.f32 %v2485, %v2428
        %v2490 = vadd.f32 %v2486, %v2430
        %s2491 = scalar_lea.vmem %s299, 32 [#allocation10]
        %2492 = vst [vmem:[%s2491] sm:$0xff] %v2487
        %2493 = vst [vmem:[%s2491 + $0x8] sm:$0xff] %v2488
        %2494 = vst [vmem:[%s2491 + $0x10] sm:$0xff] %v2489
        %2495 = vst [vmem:[%s2491 + $0x18] sm:$0xff] %v2490
        %s2496 = scalar_lea.vmem %s268, 64 [#allocation7]
        %v2497 = vld [vmem:[%s2496] sm:$0xff]
        %v2498 = vld [vmem:[%s2496 + $0x8] sm:$0xff]
        %v2499 = vld [vmem:[%s2496 + $0x10] sm:$0xff]
        %v2500 = vld [vmem:[%s2496 + $0x18] sm:$0xff]
        %v2501 = vadd.f32 %v2497, %v2442
        %v2502 = vadd.f32 %v2498, %v2444
        %v2503 = vadd.f32 %v2499, %v2447
        %v2504 = vadd.f32 %v2500, %v2449
        %s2505 = scalar_lea.vmem %s299, 64 [#allocation10]
        %2506 = vst [vmem:[%s2505] sm:$0xff] %v2501
        %2507 = vst [vmem:[%s2505 + $0x8] sm:$0xff] %v2502
        %2508 = vst [vmem:[%s2505 + $0x10] sm:$0xff] %v2503
        %2509 = vst [vmem:[%s2505 + $0x18] sm:$0xff] %v2504
        %s2510 = scalar_lea.vmem %s268, 96 [#allocation7]
        %v2511 = vld [vmem:[%s2510] sm:$0xff]
        %v2512 = vld [vmem:[%s2510 + $0x8] sm:$0xff]
        %v2513 = vld [vmem:[%s2510 + $0x10] sm:$0xff]
        %v2514 = vld [vmem:[%s2510 + $0x18] sm:$0xff]
        %v2515 = vadd.f32 %v2511, %v2461
        %v2516 = vadd.f32 %v2512, %v2463
        %v2517 = vadd.f32 %v2513, %v2466
        %v2518 = vadd.f32 %v2514, %v2468
        %s2519 = scalar_lea.vmem %s299, 96 [#allocation10]
        %2520 = vst [vmem:[%s2519] sm:$0xff] %v2515
        %2521 = vst [vmem:[%s2519 + $0x8] sm:$0xff] %v2516
        %2522 = vst [vmem:[%s2519 + $0x10] sm:$0xff] %v2517
        %2523 = vst [vmem:[%s2519 + $0x18] sm:$0xff] %v2518
        %s2524 = sand.u32 %s184, 1
        %s2525 = scalar_lea.sflag [#allocation9], %s2524
        %s2526 = sand.u32 %s184, 1
        %s2527 = smul.addr %s2526, 128
        %s2528 = scalar_lea.vmem [#allocation10], %s2527
        // Predicated region
        $region60: #{tpu_custom_call.1} parent=47 // pred_check
          %p2529 = pneg %p194
        $region61: #{tpu_custom_call.1} parent=47 // pred_check_branch
          %2531 = sbr.rel (%p2529) target = $region63
        $region62: #{tpu_custom_call.1} parent=47 // pred_region
          %s2532 = smul.u32 4, %s24
          %2534 = vsyncadd %s2525, 0
          %s2535 = smul.addr %s2532, 4
          %s2536 = smul.addr %s2535, 8
          %s2537 = scalar_lea.hbm %s7, %s2536
          %s2538 = sshll.u32 %s2528, 4
          %s2539 = int_to_ptr.vmem [resolvable:$true] %s2538
          %s2540 = sshll.u32 %s2537, 4
          %s2541 = int_to_ptr.hbm [resolvable:$true] %s2540
          %2546 = dma.vmem_to_hbm [thread:$0]  %s2539, 2048, %s2541, %s2525, 128, 128, 8
        $region63: #{tpu_custom_call.1} parent=47 // pred_fallthru
          _
      $region48: #{tpu_custom_call.1} parent=5 // pred_fallthru
        _
      %p2547 = scmp.le.s32.totalorder 2, %s19
      // Predicated region
      $region64: #{tpu_custom_call.1} parent=5 // pred_check
        %p2548 = pneg %p2547
      $region65: #{tpu_custom_call.1} parent=5 // pred_check_branch
        %2550 = sbr.rel (%p2548) target = $region67
      $region66: #{tpu_custom_call.1} parent=5 // pred_region
        %s2551 = ssub.s32 %s19, 2
        // Predicated region
        $region68: #{tpu_custom_call.1} parent=66 // pred_check
          %p2552 = pneg %p200
        $region69: #{tpu_custom_call.1} parent=66 // pred_check_branch
          %2554 = sbr.rel (%p2552) target = $region71
        $region70: #{tpu_custom_call.1} parent=66 // pred_region
          %s2555 = sand.u32 %s185, 1
          %s2556 = scalar_lea.sflag [#allocation9], %s2555
          %s2557 = sand.u32 %s185, 1
          %s2558 = smul.addr %s2557, 128
          %s2559 = scalar_lea.vmem [#allocation10], %s2558
          %2561 = dma.done %s2556, 2048
        $region71: #{tpu_custom_call.1} parent=66 // pred_fallthru
          _
      $region67: #{tpu_custom_call.1} parent=5 // pred_fallthru
        _
    $region6: #{tpu_custom_call.1} parent=1 // loop_footer
      %s23 = sadd.s32 1, %s19
    $region7: #{tpu_custom_call.1} parent=1 // loop_footer_branch
      %18 = sbr.rel target = $region3
    $region8: #{tpu_custom_call.1} parent=1 // loop_exit
      _
    %2562 = vsyncpa [#allocation8], 1
    %s2563 = scalar_lea.sflag [#allocation8], 1
    %2564 = vsyncpa %s2563, 1
    %2565 = vsyncpa [#allocation9], 1
    %s2566 = scalar_lea.sflag [#allocation9], 1
    %2567 = vsyncpa %s2566, 1

</llo_original>
